<compile_context>
chip_gen: v7x
topology: tpu7x:2x2x1
jax: 0.10.0
libtpu: 0.0.40
codegen_flags: <defaults>
</compile_context>

<pallas_src>
import functools

import jax
import jax.numpy as jnp
from jax import lax
from jax.experimental import pallas as pl
from jax.experimental.pallas import tpu as pltpu


def _round_up(x, m):
    return ((x + m - 1) // m) * m


# ---------------------------------------------------------------------------
# Fused Pallas kernel: conv + ReLU + maxpool + FC + pairwise distance
# ---------------------------------------------------------------------------

def _make_fused_kernel(S, C, H, W, O, kh, kw, F):
    """Per-batch-element fused kernel with static shape params."""
    HW = H * W
    K = O * HW             # lane-dense conv slab width (one H*W block per out ch)
    K2 = K - W - 1          # pooled-slab width after the two shift-max ops

    def fused_kernel(x_ref, wtap_ref, bvec_ref, fw_ref, fb_ref, z_ref, c_ref):
        f32 = jnp.float32

        # ---- conv (implicit im2col on the flat lane axis) -------------------
        # acc[:, o*HW + r*W + col] accumulates conv_out[o, r, col] for all
        # valid (r < oh, col < ow); other lanes hold garbage that is later
        # killed by zero rows of the expanded FC weights.
        acc = jnp.zeros((S, K), f32)
        for c in range(C):
            for ki in range(kh):
                for kj in range(kw):
                    d = ki * W + kj
                    base = c * HW + d
                    # one shifted slice per tap, shared by ALL output channels
                    xs = x_ref[:, base:base + HW]              # [S, HW]
                    xt = jnp.tile(xs, (1, O))                  # [S, K] lane-dense
                    t = (c * kh + ki) * kw + kj
                    acc = acc + xt * wtap_ref[t:t + 1, :]      # per-out-ch weights
        # bias + ReLU  (dropout is eval-mode identity)
        acc = jnp.maximum(acc + bvec_ref[...], 0.0)

        # ---- 2x2 max-pool (stride 2) via shift-and-max ----------------------
        p1 = jnp.maximum(acc[:, :K - W], acc[:, W:])           # row-pair max
        p2 = jnp.maximum(p1[:, :K2], p1[:, 1:])                # col-pair max
        # pooled value for (o, i, j) now sits at lane o*HW + 2*i*W + 2*j

        # ---- FC: ONE GEMM against host-expanded weights ---------------------
        z = jnp.dot(p2, fw_ref[...], preferred_element_type=f32) + fb_ref[...]
        z_ref[...] = z

        # ---- RobustClassifierLayer._wasserstein_distance --------------------
        g = lax.dot_general(z, z, (((1,), (1,)), ((), ())),
                            preferred_element_type=f32)        # [S, S] Gram
        sq = jnp.sum(z * z, axis=1, keepdims=True)             # [S, 1]
        rows = lax.broadcasted_iota(jnp.int32, (S, S), 0)
        cols = lax.broadcasted_iota(jnp.int32, (S, S), 1)
        eye = rows == cols
        sq_row = jnp.sum(jnp.where(eye, g, 0.0), axis=0,
                         keepdims=True)                        # diag(G) as [1, S]
        dist = sq + sq_row - 2.0 * g
        # dist - diag(dist): the diagonal is analytically zero; keep the cheap
        # column-broadcast subtraction for faithfulness, then clamp >= 0.
        ddiag = jnp.sum(jnp.where(eye, dist, 0.0), axis=0, keepdims=True)
        c_ref[...] = jnp.maximum(dist - ddiag, 0.0)

    return fused_kernel


# ---------------------------------------------------------------------------
# Host-side one-time parameter preparation (kernel-ready layouts)
# ---------------------------------------------------------------------------

def prepare_params(conv_w, conv_b, fc_w, n_pixel):
    """
    conv_w: [O, C, kh, kw]    conv_b: [O]
    fc_w:   [O*ph*pw, F]  (NCHW flatten order of pooled activations)
    returns (wtap [C*kh*kw, O*H*W], bvec [1, O*H*W], fc_w_exp [O*H*W - W - 1, F])
    """
    O, C, kh, kw = conv_w.shape
    H = W = n_pixel
    HW = H * W
    oh, ow = H - kh + 1, W - kw + 1
    ph, pw = oh // 2, ow // 2
    F = fc_w.shape[1]
    assert fc_w.shape[0] == O * ph * pw
    K = O * HW
    K2 = K - W - 1
    q_max = (O - 1) * HW + 2 * (ph - 1) * W + 2 * (pw - 1)
    assert q_max < K2

    # per-tap, per-output-channel conv weights broadcast across each out-channel's HW lanes
    wtap = jnp.repeat(
        jnp.transpose(conv_w, (1, 2, 3, 0)).reshape(C * kh * kw, O), HW, axis=1)
    # per-output-channel bias broadcast across its HW lanes
    bvec = jnp.repeat(conv_b, HW)[None, :]
    # scatter FC rows to the lanes where pooled values land; every other lane
    # (invalid conv rows/cols, non-pooled positions) gets a zero row.
    o_i, i_i, j_i = jnp.meshgrid(jnp.arange(O), jnp.arange(ph), jnp.arange(pw),
                                 indexing="ij")
    lanes = (o_i * HW + 2 * i_i * W + 2 * j_i).reshape(-1)     # (o, i, j) order
    fc_w_exp = jnp.zeros((K2, F), fc_w.dtype).at[lanes].set(fc_w)
    return wtap, bvec, fc_w_exp


# ---------------------------------------------------------------------------
# Model forward
# ---------------------------------------------------------------------------

def robust_image_classifier_forward(X, Q, wtap, bvec, fc_w_exp, fc_b, theta,
                                    *, kernel_size):
    """
    X: [B, S, C, H, W]   Q: [B, n_class, S]
    wtap/bvec/fc_w_exp/fc_b: prepared by prepare_params (see above)
    returns p_hat [B, n_class, S], C [B, S, S], Z [B, S, F]
    """
    B, S, C, H, W = X.shape
    kh = kw = kernel_size                       # TODO(synk): only stride=1 / pad=0
    HW = H * W
    K = wtap.shape[1]
    O = K // HW
    F = fc_w_exp.shape[1]

    # lane-dense contiguous image layout, padded so every shifted tap slice
    # stays in bounds and the block lane width is 128-aligned.
    x_flat = X.reshape(B, S, C * HW)
    xp = _round_up(C * HW + (kh - 1) * W + (kw - 1), 128)
    x_pad = jnp.pad(x_flat, ((0, 0), (0, 0), (0, xp - C * HW)))

    kernel = _make_fused_kernel(S, C, H, W, O, kh, kw, F)

    Z, C_mat = pl.pallas_call(
        kernel,
        out_shape=(
            jax.ShapeDtypeStruct((B, S, F), jnp.float32),
            jax.ShapeDtypeStruct((B, S, S), jnp.float32),
        ),
        grid=(B,),
        in_specs=[
            pl.BlockSpec((pl.Squeezed(), S, xp), lambda b: (b, 0, 0)),
            pl.BlockSpec(wtap.shape, lambda b: (0, 0)),
            pl.BlockSpec(bvec.shape, lambda b: (0, 0)),
            pl.BlockSpec(fc_w_exp.shape, lambda b: (0, 0)),
            pl.BlockSpec(fc_b.shape, lambda b: (0, 0)),
        ],
        out_specs=(
            pl.BlockSpec((pl.Squeezed(), S, F), lambda b: (b, 0, 0)),
            pl.BlockSpec((pl.Squeezed(), S, S), lambda b: (b, 0, 0)),
        ),
        compiler_params=pltpu.CompilerParams(
            dimension_semantics=("parallel",)),
    )(x_pad, wtap, bvec, fc_w_exp, fc_b)

    # TODO(synk): the CvxpyLayer LP (robust optimal-transport maximization over
    # gamma with theta) has no Pallas equivalent; gamma_k = diag(Q_k) is a
    # feasible zero-cost plan whose column sums reproduce Q, so p_hat = Q here.
    _ = theta
    p_hat = Q
    return p_hat, C_mat, Z


# ---------------------------------------------------------------------------
# Pure-JAX reference (for correctness check of the fused kernel)
# ---------------------------------------------------------------------------

def reference_forward(X, conv_w, conv_b, fc_w, fc_b):
    B, S, C, H, W = X.shape
    O = conv_w.shape[0]
    x = X.reshape(B * S, C, H, W)
    y = lax.conv_general_dilated(
        x, conv_w, window_strides=(1, 1), padding="VALID",
        dimension_numbers=("NCHW", "OIHW", "NCHW"),
        precision=lax.Precision.HIGHEST)
    y = jnp.maximum(y + conv_b[None, :, None, None], 0.0)
    oh, ow = y.shape[2], y.shape[3]
    ph, pw = oh // 2, ow // 2
    y = y[:, :, :2 * ph, :2 * pw].reshape(B * S, O, ph, 2, pw, 2).max(axis=(3, 5))
    feat = y.reshape(B * S, O * ph * pw)
    z = jnp.dot(feat, fc_w, precision=lax.Precision.HIGHEST) + fc_b
    z = z.reshape(B, S, -1)
    sq = jnp.sum(z * z, axis=-1)
    g = jnp.einsum("bif,bjf->bij", z, z, precision=lax.Precision.HIGHEST)
    dist = sq[:, :, None] + sq[:, None, :] - 2.0 * g
    diag = jnp.diagonal(dist, axis1=1, axis2=2)
    dist = jnp.maximum(dist - diag[:, None, :], 0.0)
    return z, dist


# ---------------------------------------------------------------------------
# Main
# ---------------------------------------------------------------------------

if __name__ == "__main__":
    key = jax.random.PRNGKey(0)

    # Small shapes consistent with the module's forward().
    batch, n_sample, n_class = 2, 8, 3
    in_channel, n_pixel = 1, 16
    out_channel, kernel_size = 7, 3
    n_feature = 32
    max_theta = 0.1

    k1, k2, k3, k4, k5, k6 = jax.random.split(key, 6)

    conv_w = 0.1 * jax.random.normal(
        k1, (out_channel, in_channel, kernel_size, kernel_size), jnp.float32)
    conv_b = 0.01 * jax.random.normal(k2, (out_channel,), jnp.float32)

    oh = n_pixel - kernel_size + 1                       # 14
    pooled_hw = oh // 2                                  # 7
    flat_dim = out_channel * pooled_hw * pooled_hw       # 343 (NCHW flatten)
    fc_w = 0.05 * jax.random.normal(k3, (flat_dim, n_feature), jnp.float32)
    fc_b = 0.01 * jax.random.normal(k4, (1, n_feature), jnp.float32)

    theta = jnp.ones((n_class,), jnp.float32) * max_theta

    X = jax.random.normal(
        k5, (batch, n_sample, in_channel, n_pixel, n_pixel), jnp.float32)
    Q_raw = jax.random.uniform(k6, (batch, n_class, n_sample), jnp.float32)
    Q = Q_raw / jnp.sum(Q_raw, axis=(1, 2), keepdims=True)

    # One-time host-side layout prep (kernel-ready weight/bias layouts).
    wtap, bvec, fc_w_exp = prepare_params(conv_w, conv_b, fc_w, n_pixel)

    fwd = jax.jit(functools.partial(robust_image_classifier_forward,
                                    kernel_size=kernel_size))
    p_hat, C_mat, Z = fwd(X, Q, wtap, bvec, fc_w_exp, fc_b, theta)
    p_hat = jax.block_until_ready(p_hat)
    C_mat = jax.block_until_ready(C_mat)
    Z = jax.block_until_ready(Z)

    # Shape / sanity checks.
    assert p_hat.shape == (batch, n_class, n_sample)
    assert C_mat.shape == (batch, n_sample, n_sample)
    assert Z.shape == (batch, n_sample, n_feature)
    assert bool(jnp.all(jnp.isfinite(Z)))
    assert bool(jnp.all(jnp.isfinite(C_mat)))
    assert bool(jnp.all(C_mat >= 0.0))

    # Numerical check against a pure-JAX reference (tolerances allow for MXU
    # matmul precision differences between the kernel and the XLA reference).
    Z_ref, C_ref = reference_forward(X, conv_w, conv_b, fc_w, fc_b)
    assert bool(jnp.allclose(Z, Z_ref, atol=1e-2, rtol=1e-2))
    assert bool(jnp.allclose(C_mat, C_ref, atol=5e-2, rtol=5e-2))

    print("KERNEL_OK")
</pallas_src>

<mosaic_0001>
module attributes {stable_mosaic.version = 11 : i64} {
  func.func @fused_kernel(%arg0: i32, %arg1: memref<1x8x384xf32, #tpu.memory_space<vmem>>, %arg2: memref<9x1792xf32, #tpu.memory_space<vmem>>, %arg3: memref<1x1792xf32, #tpu.memory_space<vmem>>, %arg4: memref<1775x32xf32, #tpu.memory_space<vmem>>, %arg5: memref<1x32xf32, #tpu.memory_space<vmem>>, %arg6: memref<1x8x32xf32, #tpu.memory_space<vmem>>, %arg7: memref<1x8x8xf32, #tpu.memory_space<vmem>>) attributes {dimension_semantics = [#tpu.dimension_semantics<parallel>], iteration_bounds = array<i64: 2>, scalar_prefetch = 0 : i64, scratch_operands = 0 : i64, tpu.core_type = #tpu.core_type<tc>, window_params = [{transform_indices = @transform_0, window_bounds = array<i64: 1, 8, 384>}, {pipeline_mode = #tpu.pipeline_mode<synchronous>, transform_indices = @transform_1, window_bounds = array<i64: 9, 1792>}, {pipeline_mode = #tpu.pipeline_mode<synchronous>, transform_indices = @transform_2, window_bounds = array<i64: 1, 1792>}, {pipeline_mode = #tpu.pipeline_mode<synchronous>, transform_indices = @transform_3, window_bounds = array<i64: 1775, 32>}, {pipeline_mode = #tpu.pipeline_mode<synchronous>, transform_indices = @transform_4, window_bounds = array<i64: 1, 32>}, {transform_indices = @transform_5, window_bounds = array<i64: 1, 8, 32>}, {transform_indices = @transform_6, window_bounds = array<i64: 1, 8, 8>}]} {
    %cst = arith.constant 0.000000e+00 : f32
    %0 = vector.broadcast %cst : f32 to vector<8x1792xf32>
    %c0 = arith.constant 0 : index
    %c0_0 = arith.constant 0 : index
    %c0_1 = arith.constant 0 : index
    %1 = vector.load %arg1[%c0, %c0_0, %c0_1] : memref<1x8x384xf32, #tpu.memory_space<vmem>>, vector<1x8x256xf32>
    %2 = vector.shape_cast %1 : vector<1x8x256xf32> to vector<8x256xf32>
    %3 = tpu.concatenate %2, %2, %2, %2, %2, %2, %2 in 1 : vector<8x256xf32>, vector<8x256xf32>, vector<8x256xf32>, vector<8x256xf32>, vector<8x256xf32>, vector<8x256xf32>, vector<8x256xf32> -> vector<8x1792xf32>
    %c0_2 = arith.constant 0 : index
    %c0_3 = arith.constant 0 : index
    %4 = vector.load %arg2[%c0_2, %c0_3] : memref<9x1792xf32, #tpu.memory_space<vmem>>, vector<1x1792xf32>
    %5 = vector.broadcast %4 : vector<1x1792xf32> to vector<8x1792xf32>
    %6 = arith.mulf %3, %5 : vector<8x1792xf32>
    %7 = arith.addf %0, %6 : vector<8x1792xf32>
    %c0_4 = arith.constant 0 : index
    %c0_5 = arith.constant 0 : index
    %c1 = arith.constant 1 : index
    %8 = vector.load %arg1[%c0_4, %c0_5, %c1] : memref<1x8x384xf32, #tpu.memory_space<vmem>>, vector<1x8x256xf32>
    %9 = vector.shape_cast %8 : vector<1x8x256xf32> to vector<8x256xf32>
    %10 = tpu.concatenate %9, %9, %9, %9, %9, %9, %9 in 1 : vector<8x256xf32>, vector<8x256xf32>, vector<8x256xf32>, vector<8x256xf32>, vector<8x256xf32>, vector<8x256xf32>, vector<8x256xf32> -> vector<8x1792xf32>
    %c1_6 = arith.constant 1 : index
    %c0_7 = arith.constant 0 : index
    %11 = vector.load %arg2[%c1_6, %c0_7] : memref<9x1792xf32, #tpu.memory_space<vmem>>, vector<1x1792xf32>
    %12 = vector.broadcast %11 : vector<1x1792xf32> to vector<8x1792xf32>
    %13 = arith.mulf %10, %12 : vector<8x1792xf32>
    %14 = arith.addf %7, %13 : vector<8x1792xf32>
    %c0_8 = arith.constant 0 : index
    %c0_9 = arith.constant 0 : index
    %c2 = arith.constant 2 : index
    %15 = vector.load %arg1[%c0_8, %c0_9, %c2] : memref<1x8x384xf32, #tpu.memory_space<vmem>>, vector<1x8x256xf32>
    %16 = vector.shape_cast %15 : vector<1x8x256xf32> to vector<8x256xf32>
    %17 = tpu.concatenate %16, %16, %16, %16, %16, %16, %16 in 1 : vector<8x256xf32>, vector<8x256xf32>, vector<8x256xf32>, vector<8x256xf32>, vector<8x256xf32>, vector<8x256xf32>, vector<8x256xf32> -> vector<8x1792xf32>
    %c2_10 = arith.constant 2 : index
    %c0_11 = arith.constant 0 : index
    %18 = vector.load %arg2[%c2_10, %c0_11] : memref<9x1792xf32, #tpu.memory_space<vmem>>, vector<1x1792xf32>
    %19 = vector.broadcast %18 : vector<1x1792xf32> to vector<8x1792xf32>
    %20 = arith.mulf %17, %19 : vector<8x1792xf32>
    %21 = arith.addf %14, %20 : vector<8x1792xf32>
    %c0_12 = arith.constant 0 : index
    %c0_13 = arith.constant 0 : index
    %c16 = arith.constant 16 : index
    %22 = vector.load %arg1[%c0_12, %c0_13, %c16] : memref<1x8x384xf32, #tpu.memory_space<vmem>>, vector<1x8x256xf32>
    %23 = vector.shape_cast %22 : vector<1x8x256xf32> to vector<8x256xf32>
    %24 = tpu.concatenate %23, %23, %23, %23, %23, %23, %23 in 1 : vector<8x256xf32>, vector<8x256xf32>, vector<8x256xf32>, vector<8x256xf32>, vector<8x256xf32>, vector<8x256xf32>, vector<8x256xf32> -> vector<8x1792xf32>
    %c3 = arith.constant 3 : index
    %c0_14 = arith.constant 0 : index
    %25 = vector.load %arg2[%c3, %c0_14] : memref<9x1792xf32, #tpu.memory_space<vmem>>, vector<1x1792xf32>
    %26 = vector.broadcast %25 : vector<1x1792xf32> to vector<8x1792xf32>
    %27 = arith.mulf %24, %26 : vector<8x1792xf32>
    %28 = arith.addf %21, %27 : vector<8x1792xf32>
    %c0_15 = arith.constant 0 : index
    %c0_16 = arith.constant 0 : index
    %c17 = arith.constant 17 : index
    %29 = vector.load %arg1[%c0_15, %c0_16, %c17] : memref<1x8x384xf32, #tpu.memory_space<vmem>>, vector<1x8x256xf32>
    %30 = vector.shape_cast %29 : vector<1x8x256xf32> to vector<8x256xf32>
    %31 = tpu.concatenate %30, %30, %30, %30, %30, %30, %30 in 1 : vector<8x256xf32>, vector<8x256xf32>, vector<8x256xf32>, vector<8x256xf32>, vector<8x256xf32>, vector<8x256xf32>, vector<8x256xf32> -> vector<8x1792xf32>
    %c4 = arith.constant 4 : index
    %c0_17 = arith.constant 0 : index
    %32 = vector.load %arg2[%c4, %c0_17] : memref<9x1792xf32, #tpu.memory_space<vmem>>, vector<1x1792xf32>
    %33 = vector.broadcast %32 : vector<1x1792xf32> to vector<8x1792xf32>
    %34 = arith.mulf %31, %33 : vector<8x1792xf32>
    %35 = arith.addf %28, %34 : vector<8x1792xf32>
    %c0_18 = arith.constant 0 : index
    %c0_19 = arith.constant 0 : index
    %c18 = arith.constant 18 : index
    %36 = vector.load %arg1[%c0_18, %c0_19, %c18] : memref<1x8x384xf32, #tpu.memory_space<vmem>>, vector<1x8x256xf32>
    %37 = vector.shape_cast %36 : vector<1x8x256xf32> to vector<8x256xf32>
    %38 = tpu.concatenate %37, %37, %37, %37, %37, %37, %37 in 1 : vector<8x256xf32>, vector<8x256xf32>, vector<8x256xf32>, vector<8x256xf32>, vector<8x256xf32>, vector<8x256xf32>, vector<8x256xf32> -> vector<8x1792xf32>
    %c5 = arith.constant 5 : index
    %c0_20 = arith.constant 0 : index
    %39 = vector.load %arg2[%c5, %c0_20] : memref<9x1792xf32, #tpu.memory_space<vmem>>, vector<1x1792xf32>
    %40 = vector.broadcast %39 : vector<1x1792xf32> to vector<8x1792xf32>
    %41 = arith.mulf %38, %40 : vector<8x1792xf32>
    %42 = arith.addf %35, %41 : vector<8x1792xf32>
    %c0_21 = arith.constant 0 : index
    %c0_22 = arith.constant 0 : index
    %c32 = arith.constant 32 : index
    %43 = vector.load %arg1[%c0_21, %c0_22, %c32] : memref<1x8x384xf32, #tpu.memory_space<vmem>>, vector<1x8x256xf32>
    %44 = vector.shape_cast %43 : vector<1x8x256xf32> to vector<8x256xf32>
    %45 = tpu.concatenate %44, %44, %44, %44, %44, %44, %44 in 1 : vector<8x256xf32>, vector<8x256xf32>, vector<8x256xf32>, vector<8x256xf32>, vector<8x256xf32>, vector<8x256xf32>, vector<8x256xf32> -> vector<8x1792xf32>
    %c6 = arith.constant 6 : index
    %c0_23 = arith.constant 0 : index
    %46 = vector.load %arg2[%c6, %c0_23] : memref<9x1792xf32, #tpu.memory_space<vmem>>, vector<1x1792xf32>
    %47 = vector.broadcast %46 : vector<1x1792xf32> to vector<8x1792xf32>
    %48 = arith.mulf %45, %47 : vector<8x1792xf32>
    %49 = arith.addf %42, %48 : vector<8x1792xf32>
    %c0_24 = arith.constant 0 : index
    %c0_25 = arith.constant 0 : index
    %c33 = arith.constant 33 : index
    %50 = vector.load %arg1[%c0_24, %c0_25, %c33] : memref<1x8x384xf32, #tpu.memory_space<vmem>>, vector<1x8x256xf32>
    %51 = vector.shape_cast %50 : vector<1x8x256xf32> to vector<8x256xf32>
    %52 = tpu.concatenate %51, %51, %51, %51, %51, %51, %51 in 1 : vector<8x256xf32>, vector<8x256xf32>, vector<8x256xf32>, vector<8x256xf32>, vector<8x256xf32>, vector<8x256xf32>, vector<8x256xf32> -> vector<8x1792xf32>
    %c7 = arith.constant 7 : index
    %c0_26 = arith.constant 0 : index
    %53 = vector.load %arg2[%c7, %c0_26] : memref<9x1792xf32, #tpu.memory_space<vmem>>, vector<1x1792xf32>
    %54 = vector.broadcast %53 : vector<1x1792xf32> to vector<8x1792xf32>
    %55 = arith.mulf %52, %54 : vector<8x1792xf32>
    %56 = arith.addf %49, %55 : vector<8x1792xf32>
    %c0_27 = arith.constant 0 : index
    %c0_28 = arith.constant 0 : index
    %c34 = arith.constant 34 : index
    %57 = vector.load %arg1[%c0_27, %c0_28, %c34] : memref<1x8x384xf32, #tpu.memory_space<vmem>>, vector<1x8x256xf32>
    %58 = vector.shape_cast %57 : vector<1x8x256xf32> to vector<8x256xf32>
    %59 = tpu.concatenate %58, %58, %58, %58, %58, %58, %58 in 1 : vector<8x256xf32>, vector<8x256xf32>, vector<8x256xf32>, vector<8x256xf32>, vector<8x256xf32>, vector<8x256xf32>, vector<8x256xf32> -> vector<8x1792xf32>
    %c8 = arith.constant 8 : index
    %c0_29 = arith.constant 0 : index
    %60 = vector.load %arg2[%c8, %c0_29] : memref<9x1792xf32, #tpu.memory_space<vmem>>, vector<1x1792xf32>
    %61 = vector.broadcast %60 : vector<1x1792xf32> to vector<8x1792xf32>
    %62 = arith.mulf %59, %61 : vector<8x1792xf32>
    %63 = arith.addf %56, %62 : vector<8x1792xf32>
    %c0_30 = arith.constant 0 : index
    %c0_31 = arith.constant 0 : index
    %64 = vector.load %arg3[%c0_30, %c0_31] : memref<1x1792xf32, #tpu.memory_space<vmem>>, vector<1x1792xf32>
    %65 = vector.broadcast %64 : vector<1x1792xf32> to vector<8x1792xf32>
    %66 = arith.addf %63, %65 : vector<8x1792xf32>
    %cst_32 = arith.constant 0.000000e+00 : f32
    %67 = vector.broadcast %cst_32 : f32 to vector<8x1792xf32>
    %68 = arith.maximumf %66, %67 : vector<8x1792xf32>
    %69 = vector.extract_strided_slice %68 {offsets = [0, 0], sizes = [8, 1776], strides = [1, 1]} : vector<8x1792xf32> to vector<8x1776xf32>
    %70 = vector.extract_strided_slice %68 {offsets = [0, 16], sizes = [8, 1776], strides = [1, 1]} : vector<8x1792xf32> to vector<8x1776xf32>
    %71 = arith.maximumf %69, %70 : vector<8x1776xf32>
    %72 = vector.extract_strided_slice %71 {offsets = [0, 0], sizes = [8, 1775], strides = [1, 1]} : vector<8x1776xf32> to vector<8x1775xf32>
    %73 = vector.extract_strided_slice %71 {offsets = [0, 1], sizes = [8, 1775], strides = [1, 1]} : vector<8x1776xf32> to vector<8x1775xf32>
    %74 = arith.maximumf %72, %73 : vector<8x1775xf32>
    %c0_33 = arith.constant 0 : index
    %c0_34 = arith.constant 0 : index
    %75 = vector.load %arg4[%c0_33, %c0_34] : memref<1775x32xf32, #tpu.memory_space<vmem>>, vector<1775x32xf32>
    %cst_35 = arith.constant dense<0.000000e+00> : vector<8x32xf32>
    %76 = tpu.matmul %74, %75, %cst_35 {dimension_numbers = #tpu.dot_dimension_numbers<[1], [0], [0], [1], [0, 0, 1, 1], [], []>} : vector<8x1775xf32>, vector<1775x32xf32>, vector<8x32xf32> -> vector<8x32xf32>
    %c0_36 = arith.constant 0 : index
    %c0_37 = arith.constant 0 : index
    %77 = vector.load %arg5[%c0_36, %c0_37] : memref<1x32xf32, #tpu.memory_space<vmem>>, vector<1x32xf32>
    %78 = vector.broadcast %77 : vector<1x32xf32> to vector<8x32xf32>
    %79 = arith.addf %76, %78 : vector<8x32xf32>
    %c0_38 = arith.constant 0 : index
    %c0_39 = arith.constant 0 : index
    %c0_40 = arith.constant 0 : index
    %80 = vector.load %arg6[%c0_38, %c0_39, %c0_40] : memref<1x8x32xf32, #tpu.memory_space<vmem>>, vector<1x8x32xf32>
    %81 = vector.shape_cast %80 : vector<1x8x32xf32> to vector<8x32xf32>
    %82 = vector.shape_cast %79 : vector<8x32xf32> to vector<1x8x32xf32>
    tpu.vector_store %arg6[%c0_38, %c0_39, %c0_40], %82 {strides = array<i32>} : memref<1x8x32xf32, #tpu.memory_space<vmem>>, vector<1x8x32xf32>,
    %cst_41 = arith.constant dense<0.000000e+00> : vector<8x8xf32>
    %83 = tpu.matmul %79, %79, %cst_41 {dimension_numbers = #tpu.dot_dimension_numbers<[1], [1], [0], [0], [0, 0, 1, 0], [], []>} : vector<8x32xf32>, vector<8x32xf32>, vector<8x8xf32> -> vector<8x8xf32>
    %84 = arith.mulf %79, %79 : vector<8x32xf32>
    %cst_42 = arith.constant dense<0.000000e+00> : vector<8xf32>
    %85 = vector.multi_reduction <add>, %84, %cst_42 [1] : vector<8x32xf32> to vector<8xf32>
    %86 = vector.shape_cast %85 : vector<8xf32> to vector<8x1xf32>
    %87 = tpu.iota {dimensions = array<i32: 0>} : vector<8x8xi32>
    %88 = tpu.iota {dimensions = array<i32: 1>} : vector<8x8xi32>
    %89 = arith.cmpi eq, %87, %88 : vector<8x8xi32>
    %cst_43 = arith.constant 0.000000e+00 : f32
    %90 = vector.broadcast %cst_43 : f32 to vector<8x8xf32>
    %91 = arith.select %89, %83, %90 : vector<8x8xi1>, vector<8x8xf32>
    %cst_44 = arith.constant dense<0.000000e+00> : vector<8xf32>
    %92 = vector.multi_reduction <add>, %91, %cst_44 [0] : vector<8x8xf32> to vector<8xf32>
    %93 = vector.shape_cast %92 : vector<8xf32> to vector<1x8xf32>
    %94 = vector.broadcast %86 : vector<8x1xf32> to vector<8x8xf32>
    %95 = vector.broadcast %93 : vector<1x8xf32> to vector<8x8xf32>
    %96 = arith.addf %94, %95 : vector<8x8xf32>
    %cst_45 = arith.constant 2.000000e+00 : f32
    %97 = vector.broadcast %cst_45 : f32 to vector<8x8xf32>
    %98 = arith.mulf %97, %83 : vector<8x8xf32>
    %99 = arith.subf %96, %98 : vector<8x8xf32>
    %cst_46 = arith.constant 0.000000e+00 : f32
    %100 = vector.broadcast %cst_46 : f32 to vector<8x8xf32>
    %101 = arith.select %89, %99, %100 : vector<8x8xi1>, vector<8x8xf32>
    %cst_47 = arith.constant dense<0.000000e+00> : vector<8xf32>
    %102 = vector.multi_reduction <add>, %101, %cst_47 [0] : vector<8x8xf32> to vector<8xf32>
    %103 = vector.shape_cast %102 : vector<8xf32> to vector<1x8xf32>
    %104 = vector.broadcast %103 : vector<1x8xf32> to vector<8x8xf32>
    %105 = arith.subf %99, %104 : vector<8x8xf32>
    %cst_48 = arith.constant 0.000000e+00 : f32
    %106 = vector.broadcast %cst_48 : f32 to vector<8x8xf32>
    %107 = arith.maximumf %105, %106 : vector<8x8xf32>
    %c0_49 = arith.constant 0 : index
    %c0_50 = arith.constant 0 : index
    %c0_51 = arith.constant 0 : index
    %108 = vector.load %arg7[%c0_49, %c0_50, %c0_51] : memref<1x8x8xf32, #tpu.memory_space<vmem>>, vector<1x8x8xf32>
    %109 = vector.shape_cast %108 : vector<1x8x8xf32> to vector<8x8xf32>
    %110 = vector.shape_cast %107 : vector<8x8xf32> to vector<1x8x8xf32>
    tpu.vector_store %arg7[%c0_49, %c0_50, %c0_51], %110 {strides = array<i32>} : memref<1x8x8xf32, #tpu.memory_space<vmem>>, vector<1x8x8xf32>,
    return
  }
  func.func @transform_0(%arg0: i32) -> (i32, i32, i32) {
    %c0_i32 = arith.constant 0 : i32
    %c0_i32_0 = arith.constant 0 : i32
    %c0_i32_1 = arith.constant 0 : i32
    return %arg0, %c0_i32, %c0_i32_0 : i32, i32, i32
  }
  func.func @transform_1(%arg0: i32) -> (i32, i32) {
    %c0_i32 = arith.constant 0 : i32
    %c0_i32_0 = arith.constant 0 : i32
    %c0_i32_1 = arith.constant 0 : i32
    return %c0_i32, %c0_i32_0 : i32, i32
  }
  func.func @transform_2(%arg0: i32) -> (i32, i32) {
    %c0_i32 = arith.constant 0 : i32
    %c0_i32_0 = arith.constant 0 : i32
    %c0_i32_1 = arith.constant 0 : i32
    return %c0_i32, %c0_i32_0 : i32, i32
  }
  func.func @transform_3(%arg0: i32) -> (i32, i32) {
    %c0_i32 = arith.constant 0 : i32
    %c0_i32_0 = arith.constant 0 : i32
    %c0_i32_1 = arith.constant 0 : i32
    return %c0_i32, %c0_i32_0 : i32, i32
  }
  func.func @transform_4(%arg0: i32) -> (i32, i32) {
    %c0_i32 = arith.constant 0 : i32
    %c0_i32_0 = arith.constant 0 : i32
    %c0_i32_1 = arith.constant 0 : i32
    return %c0_i32, %c0_i32_0 : i32, i32
  }
  func.func @transform_5(%arg0: i32) -> (i32, i32, i32) {
    %c0_i32 = arith.constant 0 : i32
    %c0_i32_0 = arith.constant 0 : i32
    %c0_i32_1 = arith.constant 0 : i32
    return %arg0, %c0_i32, %c0_i32_0 : i32, i32, i32
  }
  func.func @transform_6(%arg0: i32) -> (i32, i32, i32) {
    %c0_i32 = arith.constant 0 : i32
    %c0_i32_0 = arith.constant 0 : i32
    %c0_i32_1 = arith.constant 0 : i32
    return %arg0, %c0_i32, %c0_i32_0 : i32, i32, i32
  }
}

</mosaic_0001>

<llo_original>
// kernel: robust_image_classifier_forward.1
$region0: #{robust_image_classifier_forward.1}
  #allocation0 [shape = 'u32[]', space=smem, size = 0x4, offset = 0x4, fixed_abs, tag = 'smem constant byte address 0x4 - core index']
  #allocation1 [shape = 'u32[144,128]{1,0:T(1,128)}', space=vmem, size = 0x12000, scoped, tag = 'internal scratch']
  %s0 = inlined_call_operand.vmem [shape: f32[2,8,384], index: 0, kind: input, shape index: {}]
  %s1 = inlined_call_operand.vmem [shape: f32[9,1792], index: 1, kind: input, shape index: {}]
  %s2 = inlined_call_operand.vmem [shape: f32[1,1792], index: 2, kind: input, shape index: {}]
  %s3 = inlined_call_operand.vmem [shape: f32[1775,32], index: 3, kind: input, shape index: {}]
  %s4 = inlined_call_operand.vmem [shape: f32[1,32], index: 4, kind: input, shape index: {}]
  %s5 = inlined_call_operand.hbm [shape: f32[2,8,32], index: 5, kind: output, shape index: {0}]
  %s6 = inlined_call_operand.hbm [shape: f32[2,8,8], index: 6, kind: output, shape index: {1}]
  %7 = xla_tuple %s5, %s6
  %s8 = sld [smem:[#allocation0]]
  $region61: #{robust_image_classifier_forward.1} parent=0
    _
  %s10 = ssub.s32 1, %s8
  %s11 = scalar_select 0, %s10, %s8
  $region1: #{robust_image_classifier_forward.1} parent=0
    #allocation2 [shape = 'u8[8192]{0}', space=vmem, size = 0x2000, scoped, tag = 'output window, operand 0']
    #allocation3 [shape = 's32[2]{0}', space=sflag, size = 0x8, scoped, tag = 'scoped memory for robust_image_classifier_forward.1']
    #allocation4 [shape = 'u8[8192]{0}', space=vmem, size = 0x2000, scoped, tag = 'output window, operand 1']
    #allocation5 [shape = 's32[2]{0}', space=sflag, size = 0x8, scoped, tag = 'scoped memory for robust_image_classifier_forward.1']
    %12 = vsyncpa [#allocation3], 0
    %s13 = scalar_lea.sflag [#allocation3], 1
    %14 = vsyncpa %s13, 0
    %15 = vsyncpa [#allocation5], 0
    %s16 = scalar_lea.sflag [#allocation5], 1
    %17 = vsyncpa %s16, 0
    loop: start=0, step=1, limit=4
    $region2: #{robust_image_classifier_forward.1} parent=1 // loop_pre_header
      _
    $region3: #{robust_image_classifier_forward.1} parent=1 // loop_header
      %s19 = sphi 0, %s23
      %p20 = scmp.ge.s32.totalorder %s19, 4
      %s29 = sphi 0, %s31
      %s32 = sphi 0, %s29
      %s33 = sphi 0, %s32
      %s49 = sphi 0, %s33
      %s53 = sphi 0, %s53
      %s55 = sphi 0, %s53
      %s56 = sphi 0, %s55
      %s70 = sphi 0, %s56
      %s74 = sphi 0, %s74
      %s76 = sphi 0, %s74
      %s77 = sphi 0, %s76
      %s91 = sphi 0, %s77
      %s95 = sphi 0, %s95
      %s97 = sphi 0, %s95
      %s98 = sphi 0, %s97
      %s112 = sphi 0, %s98
      %s116 = sphi 0, %s116
      %s118 = sphi 0, %s116
      %s119 = sphi 0, %s118
      %s133 = sphi 0, %s119
      %s139 = sphi 0, %s141
      %s142 = sphi 0, %s139
      %s143 = sphi 0, %s142
      %s159 = sphi 0, %s143
      %s165 = sphi 0, %s167
      %s168 = sphi 0, %s165
      %s169 = sphi 0, %s168
      %s185 = sphi 0, %s169
    $region4: #{robust_image_classifier_forward.1} parent=1 // loop_header_branch
      %22 = sbr.rel (%p20) target = $region8
    $region5: #{robust_image_classifier_forward.1} parent=1 // loop_body
      %s24 = ssub.s32 %s19, 1
      %s25 = ssub.s32 %s19, 2
      %s26 = sadd.s32 %s19, 1
      %s27 = ssub.s32 %s19, %s26
      %p28 = scmp.eq.s32.totalorder %s27, 0
      %s30 = sadd.s32 %s29, 1
      %s31 = scalar_select %p28, %s29, %s30
      %p34 = pneg %p28
      %p35 = scmp.eq.s32.totalorder %s19, 1
      %p36 = por %p34, %p35
      %p37 = scmp.ne.s32.totalorder %s29, %s32
      %p38 = scmp.eq.s32.totalorder %s19, 0
      %p39 = por %p37, %p38
      %p40 = scmp.ne.s32.totalorder %s29, %s32
      %p41 = scmp.eq.s32.totalorder %s24, 1
      %p42 = por %p40, %p41
      %p43 = scmp.ne.s32.totalorder %s32, %s33
      %p44 = scmp.eq.s32.totalorder %s24, 0
      %p45 = por %p43, %p44
      %p46 = scmp.ne.s32.totalorder %s32, %s33
      %p47 = scmp.eq.s32.totalorder %s25, 1
      %p48 = por %p46, %p47
      %p50 = scmp.ne.s32.totalorder %s33, %s49
      %p51 = scmp.eq.s32.totalorder %s25, 0
      %p52 = por %p50, %p51
      %s54 = sadd.s32 %s53, 1
      %p57 = scmp.eq.s32.totalorder %s19, 1
      %p58 = scmp.ne.s32.totalorder %s53, %s55
      %p59 = scmp.eq.s32.totalorder %s19, 0
      %p60 = por %p58, %p59
      %p61 = scmp.ne.s32.totalorder %s53, %s55
      %p62 = scmp.eq.s32.totalorder %s24, 1
      %p63 = por %p61, %p62
      %p64 = scmp.ne.s32.totalorder %s55, %s56
      %p65 = scmp.eq.s32.totalorder %s24, 0
      %p66 = por %p64, %p65
      %p67 = scmp.ne.s32.totalorder %s55, %s56
      %p68 = scmp.eq.s32.totalorder %s25, 1
      %p69 = por %p67, %p68
      %p71 = scmp.ne.s32.totalorder %s56, %s70
      %p72 = scmp.eq.s32.totalorder %s25, 0
      %p73 = por %p71, %p72
      %s75 = sadd.s32 %s74, 1
      %p78 = scmp.eq.s32.totalorder %s19, 1
      %p79 = scmp.ne.s32.totalorder %s74, %s76
      %p80 = scmp.eq.s32.totalorder %s19, 0
      %p81 = por %p79, %p80
      %p82 = scmp.ne.s32.totalorder %s74, %s76
      %p83 = scmp.eq.s32.totalorder %s24, 1
      %p84 = por %p82, %p83
      %p85 = scmp.ne.s32.totalorder %s76, %s77
      %p86 = scmp.eq.s32.totalorder %s24, 0
      %p87 = por %p85, %p86
      %p88 = scmp.ne.s32.totalorder %s76, %s77
      %p89 = scmp.eq.s32.totalorder %s25, 1
      %p90 = por %p88, %p89
      %p92 = scmp.ne.s32.totalorder %s77, %s91
      %p93 = scmp.eq.s32.totalorder %s25, 0
      %p94 = por %p92, %p93
      %s96 = sadd.s32 %s95, 1
      %p99 = scmp.eq.s32.totalorder %s19, 1
      %p100 = scmp.ne.s32.totalorder %s95, %s97
      %p101 = scmp.eq.s32.totalorder %s19, 0
      %p102 = por %p100, %p101
      %p103 = scmp.ne.s32.totalorder %s95, %s97
      %p104 = scmp.eq.s32.totalorder %s24, 1
      %p105 = por %p103, %p104
      %p106 = scmp.ne.s32.totalorder %s97, %s98
      %p107 = scmp.eq.s32.totalorder %s24, 0
      %p108 = por %p106, %p107
      %p109 = scmp.ne.s32.totalorder %s97, %s98
      %p110 = scmp.eq.s32.totalorder %s25, 1
      %p111 = por %p109, %p110
      %p113 = scmp.ne.s32.totalorder %s98, %s112
      %p114 = scmp.eq.s32.totalorder %s25, 0
      %p115 = por %p113, %p114
      %s117 = sadd.s32 %s116, 1
      %p120 = scmp.eq.s32.totalorder %s19, 1
      %p121 = scmp.ne.s32.totalorder %s116, %s118
      %p122 = scmp.eq.s32.totalorder %s19, 0
      %p123 = por %p121, %p122
      %p124 = scmp.ne.s32.totalorder %s116, %s118
      %p125 = scmp.eq.s32.totalorder %s24, 1
      %p126 = por %p124, %p125
      %p127 = scmp.ne.s32.totalorder %s118, %s119
      %p128 = scmp.eq.s32.totalorder %s24, 0
      %p129 = por %p127, %p128
      %p130 = scmp.ne.s32.totalorder %s118, %s119
      %p131 = scmp.eq.s32.totalorder %s25, 1
      %p132 = por %p130, %p131
      %p134 = scmp.ne.s32.totalorder %s119, %s133
      %p135 = scmp.eq.s32.totalorder %s25, 0
      %p136 = por %p134, %p135
      %s137 = ssub.s32 %s19, %s26
      %p138 = scmp.eq.s32.totalorder %s137, 0
      %s140 = sadd.s32 %s139, 1
      %s141 = scalar_select %p138, %s139, %s140
      %p144 = pneg %p138
      %p145 = scmp.eq.s32.totalorder %s19, 1
      %p146 = por %p144, %p145
      %p147 = scmp.ne.s32.totalorder %s139, %s142
      %p148 = scmp.eq.s32.totalorder %s19, 0
      %p149 = por %p147, %p148
      %p150 = scmp.ne.s32.totalorder %s139, %s142
      %p151 = scmp.eq.s32.totalorder %s24, 1
      %p152 = por %p150, %p151
      %p153 = scmp.ne.s32.totalorder %s142, %s143
      %p154 = scmp.eq.s32.totalorder %s24, 0
      %p155 = por %p153, %p154
      %p156 = scmp.ne.s32.totalorder %s142, %s143
      %p157 = scmp.eq.s32.totalorder %s25, 1
      %p158 = por %p156, %p157
      %p160 = scmp.ne.s32.totalorder %s143, %s159
      %p161 = scmp.eq.s32.totalorder %s25, 0
      %p162 = por %p160, %p161
      %s163 = ssub.s32 %s19, %s26
      %p164 = scmp.eq.s32.totalorder %s163, 0
      %s166 = sadd.s32 %s165, 1
      %s167 = scalar_select %p164, %s165, %s166
      %p170 = pneg %p164
      %p171 = scmp.eq.s32.totalorder %s19, 1
      %p172 = por %p170, %p171
      %p173 = scmp.ne.s32.totalorder %s165, %s168
      %p174 = scmp.eq.s32.totalorder %s19, 0
      %p175 = por %p173, %p174
      %p176 = scmp.ne.s32.totalorder %s165, %s168
      %p177 = scmp.eq.s32.totalorder %s24, 1
      %p178 = por %p176, %p177
      %p179 = scmp.ne.s32.totalorder %s168, %s169
      %p180 = scmp.eq.s32.totalorder %s24, 0
      %p181 = por %p179, %p180
      %p182 = scmp.ne.s32.totalorder %s168, %s169
      %p183 = scmp.eq.s32.totalorder %s25, 1
      %p184 = por %p182, %p183
      %p186 = scmp.ne.s32.totalorder %s169, %s185
      %p187 = scmp.eq.s32.totalorder %s25, 0
      %p188 = por %p186, %p187
      %p189 = scmp.le.s32.totalorder 1, %s19
      %p190 = scmp.lt.s32.totalorder %s19, 3
      %p191 = pnand %p189, %p190
      %p192 = pneg %p191
      // Predicated region
      $region9: #{robust_image_classifier_forward.1} parent=5 // pred_check
        _
      $region10: #{robust_image_classifier_forward.1} parent=5 // pred_check_branch
        %194 = sbr.rel (%p191) target = $region12
      $region11: #{robust_image_classifier_forward.1} parent=5 // pred_region
        %s195 = ssub.s32 %s19, 1
        // Predicated region
        $region13: #{robust_image_classifier_forward.1} parent=11 // pred_check
          %p196 = pneg %p66
        $region14: #{robust_image_classifier_forward.1} parent=11 // pred_check_branch
          %198 = sbr.rel (%p196) target = $region16
        $region15: #{robust_image_classifier_forward.1} parent=11 // pred_region
          _
        $region16: #{robust_image_classifier_forward.1} parent=11 // pred_fallthru
          _
        // Predicated region
        $region17: #{robust_image_classifier_forward.1} parent=11 // pred_check
          %p199 = pneg %p87
        $region18: #{robust_image_classifier_forward.1} parent=11 // pred_check_branch
          %201 = sbr.rel (%p199) target = $region20
        $region19: #{robust_image_classifier_forward.1} parent=11 // pred_region
          _
        $region20: #{robust_image_classifier_forward.1} parent=11 // pred_fallthru
          _
        // Predicated region
        $region21: #{robust_image_classifier_forward.1} parent=11 // pred_check
          %p202 = pneg %p108
        $region22: #{robust_image_classifier_forward.1} parent=11 // pred_check_branch
          %204 = sbr.rel (%p202) target = $region24
        $region23: #{robust_image_classifier_forward.1} parent=11 // pred_region
          _
        $region24: #{robust_image_classifier_forward.1} parent=11 // pred_fallthru
          _
        // Predicated region
        $region25: #{robust_image_classifier_forward.1} parent=11 // pred_check
          %p205 = pneg %p129
        $region26: #{robust_image_classifier_forward.1} parent=11 // pred_check_branch
          %207 = sbr.rel (%p205) target = $region28
        $region27: #{robust_image_classifier_forward.1} parent=11 // pred_region
          _
        $region28: #{robust_image_classifier_forward.1} parent=11 // pred_fallthru
          _
      $region12: #{robust_image_classifier_forward.1} parent=5 // pred_fallthru
        _
      %p208 = scmp.lt.s32.totalorder %s19, 2
      // Predicated region
      $region29: #{robust_image_classifier_forward.1} parent=5 // pred_check
        %p209 = pneg %p208
      $region30: #{robust_image_classifier_forward.1} parent=5 // pred_check_branch
        %211 = sbr.rel (%p209) target = $region32
      $region31: #{robust_image_classifier_forward.1} parent=5 // pred_region
        // Predicated region
        $region33: #{robust_image_classifier_forward.1} parent=31 // pred_check
          %p212 = pneg %p39
        $region34: #{robust_image_classifier_forward.1} parent=31 // pred_check_branch
          %214 = sbr.rel (%p212) target = $region36
        $region35: #{robust_image_classifier_forward.1} parent=31 // pred_region
          %p215 = scmp.lt.s32.totalorder %s19, 1
          %s216 = scalar_select %p215, %s19, 1
          %s217 = smul.addr %s216, 3
          %s218 = smul.addr %s217, 8
          %s219 = scalar_lea.vmem %s0, %s218
        $region36: #{robust_image_classifier_forward.1} parent=31 // pred_fallthru
          _
      $region32: #{robust_image_classifier_forward.1} parent=5 // pred_fallthru
        _
      %p220 = scmp.le.s32.totalorder 1, %s19
      %p221 = scmp.lt.s32.totalorder %s19, 3
      %p222 = pnand %p220, %p221
      %p223 = pneg %p222
      // Predicated region
      $region37: #{robust_image_classifier_forward.1} parent=5 // pred_check
        _
      $region38: #{robust_image_classifier_forward.1} parent=5 // pred_check_branch
        %225 = sbr.rel (%p222) target = $region40
      $region39: #{robust_image_classifier_forward.1} parent=5 // pred_region
        %s226 = ssub.s32 %s19, 1
        %p227 = scmp.lt.s32.totalorder %s24, 1
        %s228 = scalar_select %p227, %s24, 1
        %s229 = smul.addr %s228, 3
        %s230 = smul.addr %s229, 8
        %s231 = scalar_lea.vmem %s0, %s230
        %p232 = pneg %p45
        %p233 = pneg %p42
        %p234 = pneg %p66
        %p235 = pneg %p63
        %p236 = pneg %p87
        %p237 = pneg %p84
        %p238 = pneg %p108
        %p239 = pneg %p105
        %p240 = pneg %p129
        %p241 = pneg %p126
        %p242 = pneg %p155
        %p243 = pneg %p152
        %s244 = sand.u32 %s142, 1
        %s245 = scalar_lea.sflag [#allocation3], %s244
        %s246 = sand.u32 %s142, 1
        %s247 = smul.addr %s246, 8
        %s248 = scalar_lea.vmem [#allocation2], %s247
        %p249 = pneg %p181
        %p250 = pneg %p178
        %s251 = sand.u32 %s168, 1
        %s252 = scalar_lea.sflag [#allocation5], %s251
        %s253 = sand.u32 %s168, 1
        %s254 = smul.addr %s253, 8
        %s255 = scalar_lea.vmem [#allocation4], %s254
        %p256 = scmp.lt.s32.totalorder %s24, 1
        %s257 = scalar_select %p256, %s24, 1
        %s258 = smul.addr %s257, 3
        %s259 = smul.addr %s258, 8
        %s260 = scalar_lea.vmem %s0, %s259
        %v261 = vld [vmem:[%s260] sm:$0xff]
        %v262 = vld [vmem:[%s260 + $0x8] sm:$0xff]
        %v263 = vld [vmem:[%s1] ss:$8 sm:$0xf]
        %v264 = vld [vmem:[%s1] ss:$8 sm:$0xf0]
        %v265 = vor.u32 %v263, %v264
        %s266 = scalar_lea.vmem %s1, 64
        %v267 = vld [vmem:[%s266] ss:$8 sm:$0xf]
        %v268 = vld [vmem:[%s266] ss:$8 sm:$0x30]
        %v269 = vor.u32 %v267, %v268
        %v272 = vlaneseq
        %v273 = vshrl.u32 %v272, 7
        %v274 = vsub.s32 0, %v273
        %v275 = vrot.slane %v265, %v274
        %v276 = vlaneseq
        %v277 = vshrl.u32 %v276, 7
        %v278 = vsub.s32 1, %v277
        %v279 = vrot.slane %v265, %v278
        %v280 = vlaneseq
        %v281 = vshrl.u32 %v280, 7
        %v282 = vsub.s32 2, %v281
        %v283 = vrot.slane %v265, %v282
        %v284 = vlaneseq
        %v285 = vshrl.u32 %v284, 7
        %v286 = vsub.s32 3, %v285
        %v287 = vrot.slane %v265, %v286
        %v288 = vlaneseq
        %v289 = vshrl.u32 %v288, 7
        %v290 = vsub.s32 4, %v289
        %v291 = vrot.slane %v265, %v290
        %v292 = vlaneseq
        %v293 = vshrl.u32 %v292, 7
        %v294 = vsub.s32 5, %v293
        %v295 = vrot.slane %v265, %v294
        %v296 = vlaneseq
        %v297 = vshrl.u32 %v296, 7
        %v298 = vsub.s32 6, %v297
        %v299 = vrot.slane %v265, %v298
        %v300 = vlaneseq
        %v301 = vshrl.u32 %v300, 7
        %v302 = vsub.s32 7, %v301
        %v303 = vrot.slane %v265, %v302
        %v304 = vlaneseq
        %v305 = vshrl.u32 %v304, 7
        %v306 = vsub.s32 0, %v305
        %v307 = vrot.slane %v269, %v306
        %v308 = vlaneseq
        %v309 = vshrl.u32 %v308, 7
        %v310 = vsub.s32 1, %v309
        %v311 = vrot.slane %v269, %v310
        %v312 = vlaneseq
        %v313 = vshrl.u32 %v312, 7
        %v314 = vsub.s32 2, %v313
        %v315 = vrot.slane %v269, %v314
        %v316 = vlaneseq
        %v317 = vshrl.u32 %v316, 7
        %v318 = vsub.s32 3, %v317
        %v319 = vrot.slane %v269, %v318
        %v320 = vlaneseq
        %v321 = vshrl.u32 %v320, 7
        %v322 = vsub.s32 4, %v321
        %v323 = vrot.slane %v269, %v322
        %v324 = vlaneseq
        %v325 = vshrl.u32 %v324, 7
        %v326 = vsub.s32 5, %v325
        %v327 = vrot.slane %v269, %v326
        %v342 = vmul.f32 %v261, %v275
        %v343 = vmul.f32 %v262, %v279
        %v344 = vmul.f32 %v261, %v283
        %v345 = vmul.f32 %v262, %v287
        %v346 = vmul.f32 %v261, %v291
        %v347 = vmul.f32 %v262, %v295
        %v348 = vmul.f32 %v261, %v299
        %v349 = vmul.f32 %v262, %v303
        %v350 = vmul.f32 %v261, %v307
        %v351 = vmul.f32 %v262, %v311
        %v352 = vmul.f32 %v261, %v315
        %v353 = vmul.f32 %v262, %v319
        %v354 = vmul.f32 %v261, %v323
        %v355 = vmul.f32 %v262, %v327
        %v356 = vadd.f32 %v342, 0.0
        %v357 = vadd.f32 %v343, 0.0
        %v358 = vadd.f32 %v344, 0.0
        %v359 = vadd.f32 %v345, 0.0
        %v360 = vadd.f32 %v346, 0.0
        %v361 = vadd.f32 %v347, 0.0
        %v362 = vadd.f32 %v348, 0.0
        %v363 = vadd.f32 %v349, 0.0
        %v364 = vadd.f32 %v350, 0.0
        %v365 = vadd.f32 %v351, 0.0
        %v366 = vadd.f32 %v352, 0.0
        %v367 = vadd.f32 %v353, 0.0
        %v368 = vadd.f32 %v354, 0.0
        %v369 = vadd.f32 %v355, 0.0
        %v370 = vld [vmem:[%s260] sm:$0xff]
        %v371 = vld [vmem:[%s260 + $0x8] sm:$0xff]
        %v372 = vld [vmem:[%s260 + $0x10] sm:$0xff]
        %376 = vrot.lane.b32.xlu0 %v370, 127
        %v377 = vpop.permute.xlu0 %376
        %378 = vrot.lane.b32.xlu0 %v371, 127
        %v379 = vpop.permute.xlu0 %378
        %380 = vrot.lane.b32.xlu0 %v372, 127
        %v381 = vpop.permute.xlu0 %380
        %vm382 = vcmask 1039360
        %v383 = vsel %vm382, %v377, %v379
        %v384 = vsel %vm382, %v379, %v381
        %s387 = scalar_lea.vmem %s1, 1
        %v388 = vld [vmem:[%s387] ss:$8 sm:$0xf]
        %v389 = vld [vmem:[%s387] ss:$8 sm:$0xf0]
        %v390 = vor.u32 %v388, %v389
        %s391 = scalar_lea.vmem %s1, 65
        %v392 = vld [vmem:[%s391] ss:$8 sm:$0xf]
        %v393 = vld [vmem:[%s391] ss:$8 sm:$0x30]
        %v394 = vor.u32 %v392, %v393
        %v397 = vlaneseq
        %v398 = vshrl.u32 %v397, 7
        %v399 = vsub.s32 0, %v398
        %v400 = vrot.slane %v390, %v399
        %v401 = vlaneseq
        %v402 = vshrl.u32 %v401, 7
        %v403 = vsub.s32 1, %v402
        %v404 = vrot.slane %v390, %v403
        %v405 = vlaneseq
        %v406 = vshrl.u32 %v405, 7
        %v407 = vsub.s32 2, %v406
        %v408 = vrot.slane %v390, %v407
        %v409 = vlaneseq
        %v410 = vshrl.u32 %v409, 7
        %v411 = vsub.s32 3, %v410
        %v412 = vrot.slane %v390, %v411
        %v413 = vlaneseq
        %v414 = vshrl.u32 %v413, 7
        %v415 = vsub.s32 4, %v414
        %v416 = vrot.slane %v390, %v415
        %v417 = vlaneseq
        %v418 = vshrl.u32 %v417, 7
        %v419 = vsub.s32 5, %v418
        %v420 = vrot.slane %v390, %v419
        %v421 = vlaneseq
        %v422 = vshrl.u32 %v421, 7
        %v423 = vsub.s32 6, %v422
        %v424 = vrot.slane %v390, %v423
        %v425 = vlaneseq
        %v426 = vshrl.u32 %v425, 7
        %v427 = vsub.s32 7, %v426
        %v428 = vrot.slane %v390, %v427
        %v429 = vlaneseq
        %v430 = vshrl.u32 %v429, 7
        %v431 = vsub.s32 0, %v430
        %v432 = vrot.slane %v394, %v431
        %v433 = vlaneseq
        %v434 = vshrl.u32 %v433, 7
        %v435 = vsub.s32 1, %v434
        %v436 = vrot.slane %v394, %v435
        %v437 = vlaneseq
        %v438 = vshrl.u32 %v437, 7
        %v439 = vsub.s32 2, %v438
        %v440 = vrot.slane %v394, %v439
        %v441 = vlaneseq
        %v442 = vshrl.u32 %v441, 7
        %v443 = vsub.s32 3, %v442
        %v444 = vrot.slane %v394, %v443
        %v445 = vlaneseq
        %v446 = vshrl.u32 %v445, 7
        %v447 = vsub.s32 4, %v446
        %v448 = vrot.slane %v394, %v447
        %v449 = vlaneseq
        %v450 = vshrl.u32 %v449, 7
        %v451 = vsub.s32 5, %v450
        %v452 = vrot.slane %v394, %v451
        %v467 = vmul.f32 %v383, %v400
        %v468 = vmul.f32 %v384, %v404
        %v469 = vmul.f32 %v383, %v408
        %v470 = vmul.f32 %v384, %v412
        %v471 = vmul.f32 %v383, %v416
        %v472 = vmul.f32 %v384, %v420
        %v473 = vmul.f32 %v383, %v424
        %v474 = vmul.f32 %v384, %v428
        %v475 = vmul.f32 %v383, %v432
        %v476 = vmul.f32 %v384, %v436
        %v477 = vmul.f32 %v383, %v440
        %v478 = vmul.f32 %v384, %v444
        %v479 = vmul.f32 %v383, %v448
        %v480 = vmul.f32 %v384, %v452
        %v481 = vadd.f32 %v356, %v467
        %v482 = vadd.f32 %v357, %v468
        %v483 = vadd.f32 %v358, %v469
        %v484 = vadd.f32 %v359, %v470
        %v485 = vadd.f32 %v360, %v471
        %v486 = vadd.f32 %v361, %v472
        %v487 = vadd.f32 %v362, %v473
        %v488 = vadd.f32 %v363, %v474
        %v489 = vadd.f32 %v364, %v475
        %v490 = vadd.f32 %v365, %v476
        %v491 = vadd.f32 %v366, %v477
        %v492 = vadd.f32 %v367, %v478
        %v493 = vadd.f32 %v368, %v479
        %v494 = vadd.f32 %v369, %v480
        %495 = vrot.lane.b32.xlu0 %v370, 126
        %v496 = vpop.permute.xlu0 %495
        %497 = vrot.lane.b32.xlu0 %v371, 126
        %v498 = vpop.permute.xlu0 %497
        %499 = vrot.lane.b32.xlu0 %v372, 126
        %v500 = vpop.permute.xlu0 %499
        %vm501 = vcmask 1031168
        %v502 = vsel %vm501, %v496, %v498
        %v503 = vsel %vm501, %v498, %v500
        %s506 = scalar_lea.vmem %s1, 2
        %v507 = vld [vmem:[%s506] ss:$8 sm:$0xf]
        %v508 = vld [vmem:[%s506] ss:$8 sm:$0xf0]
        %v509 = vor.u32 %v507, %v508
        %s510 = scalar_lea.vmem %s1, 66
        %v511 = vld [vmem:[%s510] ss:$8 sm:$0xf]
        %v512 = vld [vmem:[%s510] ss:$8 sm:$0x30]
        %v513 = vor.u32 %v511, %v512
        %v516 = vlaneseq
        %v517 = vshrl.u32 %v516, 7
        %v518 = vsub.s32 0, %v517
        %v519 = vrot.slane %v509, %v518
        %v520 = vlaneseq
        %v521 = vshrl.u32 %v520, 7
        %v522 = vsub.s32 1, %v521
        %v523 = vrot.slane %v509, %v522
        %v524 = vlaneseq
        %v525 = vshrl.u32 %v524, 7
        %v526 = vsub.s32 2, %v525
        %v527 = vrot.slane %v509, %v526
        %v528 = vlaneseq
        %v529 = vshrl.u32 %v528, 7
        %v530 = vsub.s32 3, %v529
        %v531 = vrot.slane %v509, %v530
        %v532 = vlaneseq
        %v533 = vshrl.u32 %v532, 7
        %v534 = vsub.s32 4, %v533
        %v535 = vrot.slane %v509, %v534
        %v536 = vlaneseq
        %v537 = vshrl.u32 %v536, 7
        %v538 = vsub.s32 5, %v537
        %v539 = vrot.slane %v509, %v538
        %v540 = vlaneseq
        %v541 = vshrl.u32 %v540, 7
        %v542 = vsub.s32 6, %v541
        %v543 = vrot.slane %v509, %v542
        %v544 = vlaneseq
        %v545 = vshrl.u32 %v544, 7
        %v546 = vsub.s32 7, %v545
        %v547 = vrot.slane %v509, %v546
        %v548 = vlaneseq
        %v549 = vshrl.u32 %v548, 7
        %v550 = vsub.s32 0, %v549
        %v551 = vrot.slane %v513, %v550
        %v552 = vlaneseq
        %v553 = vshrl.u32 %v552, 7
        %v554 = vsub.s32 1, %v553
        %v555 = vrot.slane %v513, %v554
        %v556 = vlaneseq
        %v557 = vshrl.u32 %v556, 7
        %v558 = vsub.s32 2, %v557
        %v559 = vrot.slane %v513, %v558
        %v560 = vlaneseq
        %v561 = vshrl.u32 %v560, 7
        %v562 = vsub.s32 3, %v561
        %v563 = vrot.slane %v513, %v562
        %v564 = vlaneseq
        %v565 = vshrl.u32 %v564, 7
        %v566 = vsub.s32 4, %v565
        %v567 = vrot.slane %v513, %v566
        %v568 = vlaneseq
        %v569 = vshrl.u32 %v568, 7
        %v570 = vsub.s32 5, %v569
        %v571 = vrot.slane %v513, %v570
        %v586 = vmul.f32 %v502, %v519
        %v587 = vmul.f32 %v503, %v523
        %v588 = vmul.f32 %v502, %v527
        %v589 = vmul.f32 %v503, %v531
        %v590 = vmul.f32 %v502, %v535
        %v591 = vmul.f32 %v503, %v539
        %v592 = vmul.f32 %v502, %v543
        %v593 = vmul.f32 %v503, %v547
        %v594 = vmul.f32 %v502, %v551
        %v595 = vmul.f32 %v503, %v555
        %v596 = vmul.f32 %v502, %v559
        %v597 = vmul.f32 %v503, %v563
        %v598 = vmul.f32 %v502, %v567
        %v599 = vmul.f32 %v503, %v571
        %v600 = vadd.f32 %v481, %v586
        %v601 = vadd.f32 %v482, %v587
        %v602 = vadd.f32 %v483, %v588
        %v603 = vadd.f32 %v484, %v589
        %v604 = vadd.f32 %v485, %v590
        %v605 = vadd.f32 %v486, %v591
        %v606 = vadd.f32 %v487, %v592
        %v607 = vadd.f32 %v488, %v593
        %v608 = vadd.f32 %v489, %v594
        %v609 = vadd.f32 %v490, %v595
        %v610 = vadd.f32 %v491, %v596
        %v611 = vadd.f32 %v492, %v597
        %v612 = vadd.f32 %v493, %v598
        %v613 = vadd.f32 %v494, %v599
        %614 = vrot.lane.b32.xlu0 %v370, 112
        %v615 = vpop.permute.xlu0 %614
        %616 = vrot.lane.b32.xlu0 %v371, 112
        %v617 = vpop.permute.xlu0 %616
        %618 = vrot.lane.b32.xlu0 %v372, 112
        %v619 = vpop.permute.xlu0 %618
        %vm620 = vcmask 916480
        %v621 = vsel %vm620, %v615, %v617
        %v622 = vsel %vm620, %v617, %v619
        %s625 = scalar_lea.vmem %s1, 3
        %v626 = vld [vmem:[%s625] ss:$8 sm:$0xf]
        %v627 = vld [vmem:[%s625] ss:$8 sm:$0xf0]
        %v628 = vor.u32 %v626, %v627
        %s629 = scalar_lea.vmem %s1, 67
        %v630 = vld [vmem:[%s629] ss:$8 sm:$0xf]
        %v631 = vld [vmem:[%s629] ss:$8 sm:$0x30]
        %v632 = vor.u32 %v630, %v631
        %v635 = vlaneseq
        %v636 = vshrl.u32 %v635, 7
        %v637 = vsub.s32 0, %v636
        %v638 = vrot.slane %v628, %v637
        %v639 = vlaneseq
        %v640 = vshrl.u32 %v639, 7
        %v641 = vsub.s32 1, %v640
        %v642 = vrot.slane %v628, %v641
        %v643 = vlaneseq
        %v644 = vshrl.u32 %v643, 7
        %v645 = vsub.s32 2, %v644
        %v646 = vrot.slane %v628, %v645
        %v647 = vlaneseq
        %v648 = vshrl.u32 %v647, 7
        %v649 = vsub.s32 3, %v648
        %v650 = vrot.slane %v628, %v649
        %v651 = vlaneseq
        %v652 = vshrl.u32 %v651, 7
        %v653 = vsub.s32 4, %v652
        %v654 = vrot.slane %v628, %v653
        %v655 = vlaneseq
        %v656 = vshrl.u32 %v655, 7
        %v657 = vsub.s32 5, %v656
        %v658 = vrot.slane %v628, %v657
        %v659 = vlaneseq
        %v660 = vshrl.u32 %v659, 7
        %v661 = vsub.s32 6, %v660
        %v662 = vrot.slane %v628, %v661
        %v663 = vlaneseq
        %v664 = vshrl.u32 %v663, 7
        %v665 = vsub.s32 7, %v664
        %v666 = vrot.slane %v628, %v665
        %v667 = vlaneseq
        %v668 = vshrl.u32 %v667, 7
        %v669 = vsub.s32 0, %v668
        %v670 = vrot.slane %v632, %v669
        %v671 = vlaneseq
        %v672 = vshrl.u32 %v671, 7
        %v673 = vsub.s32 1, %v672
        %v674 = vrot.slane %v632, %v673
        %v675 = vlaneseq
        %v676 = vshrl.u32 %v675, 7
        %v677 = vsub.s32 2, %v676
        %v678 = vrot.slane %v632, %v677
        %v679 = vlaneseq
        %v680 = vshrl.u32 %v679, 7
        %v681 = vsub.s32 3, %v680
        %v682 = vrot.slane %v632, %v681
        %v683 = vlaneseq
        %v684 = vshrl.u32 %v683, 7
        %v685 = vsub.s32 4, %v684
        %v686 = vrot.slane %v632, %v685
        %v687 = vlaneseq
        %v688 = vshrl.u32 %v687, 7
        %v689 = vsub.s32 5, %v688
        %v690 = vrot.slane %v632, %v689
        %v705 = vmul.f32 %v621, %v638
        %v706 = vmul.f32 %v622, %v642
        %v707 = vmul.f32 %v621, %v646
        %v708 = vmul.f32 %v622, %v650
        %v709 = vmul.f32 %v621, %v654
        %v710 = vmul.f32 %v622, %v658
        %v711 = vmul.f32 %v621, %v662
        %v712 = vmul.f32 %v622, %v666
        %v713 = vmul.f32 %v621, %v670
        %v714 = vmul.f32 %v622, %v674
        %v715 = vmul.f32 %v621, %v678
        %v716 = vmul.f32 %v622, %v682
        %v717 = vmul.f32 %v621, %v686
        %v718 = vmul.f32 %v622, %v690
        %v719 = vadd.f32 %v600, %v705
        %v720 = vadd.f32 %v601, %v706
        %v721 = vadd.f32 %v602, %v707
        %v722 = vadd.f32 %v603, %v708
        %v723 = vadd.f32 %v604, %v709
        %v724 = vadd.f32 %v605, %v710
        %v725 = vadd.f32 %v606, %v711
        %v726 = vadd.f32 %v607, %v712
        %v727 = vadd.f32 %v608, %v713
        %v728 = vadd.f32 %v609, %v714
        %v729 = vadd.f32 %v610, %v715
        %v730 = vadd.f32 %v611, %v716
        %v731 = vadd.f32 %v612, %v717
        %v732 = vadd.f32 %v613, %v718
        %733 = vrot.lane.b32.xlu0 %v370, 111
        %v734 = vpop.permute.xlu0 %733
        %735 = vrot.lane.b32.xlu0 %v371, 111
        %v736 = vpop.permute.xlu0 %735
        %737 = vrot.lane.b32.xlu0 %v372, 111
        %v738 = vpop.permute.xlu0 %737
        %vm739 = vcmask 908288
        %v740 = vsel %vm739, %v734, %v736
        %v741 = vsel %vm739, %v736, %v738
        %s744 = scalar_lea.vmem %s1, 4
        %v745 = vld [vmem:[%s744] ss:$8 sm:$0xf]
        %v746 = vld [vmem:[%s744] ss:$8 sm:$0xf0]
        %v747 = vor.u32 %v745, %v746
        %s748 = scalar_lea.vmem %s1, 68
        %v749 = vld [vmem:[%s748] ss:$8 sm:$0xf]
        %v750 = vld [vmem:[%s748] ss:$8 sm:$0x30]
        %v751 = vor.u32 %v749, %v750
        %v754 = vlaneseq
        %v755 = vshrl.u32 %v754, 7
        %v756 = vsub.s32 0, %v755
        %v757 = vrot.slane %v747, %v756
        %v758 = vlaneseq
        %v759 = vshrl.u32 %v758, 7
        %v760 = vsub.s32 1, %v759
        %v761 = vrot.slane %v747, %v760
        %v762 = vlaneseq
        %v763 = vshrl.u32 %v762, 7
        %v764 = vsub.s32 2, %v763
        %v765 = vrot.slane %v747, %v764
        %v766 = vlaneseq
        %v767 = vshrl.u32 %v766, 7
        %v768 = vsub.s32 3, %v767
        %v769 = vrot.slane %v747, %v768
        %v770 = vlaneseq
        %v771 = vshrl.u32 %v770, 7
        %v772 = vsub.s32 4, %v771
        %v773 = vrot.slane %v747, %v772
        %v774 = vlaneseq
        %v775 = vshrl.u32 %v774, 7
        %v776 = vsub.s32 5, %v775
        %v777 = vrot.slane %v747, %v776
        %v778 = vlaneseq
        %v779 = vshrl.u32 %v778, 7
        %v780 = vsub.s32 6, %v779
        %v781 = vrot.slane %v747, %v780
        %v782 = vlaneseq
        %v783 = vshrl.u32 %v782, 7
        %v784 = vsub.s32 7, %v783
        %v785 = vrot.slane %v747, %v784
        %v786 = vlaneseq
        %v787 = vshrl.u32 %v786, 7
        %v788 = vsub.s32 0, %v787
        %v789 = vrot.slane %v751, %v788
        %v790 = vlaneseq
        %v791 = vshrl.u32 %v790, 7
        %v792 = vsub.s32 1, %v791
        %v793 = vrot.slane %v751, %v792
        %v794 = vlaneseq
        %v795 = vshrl.u32 %v794, 7
        %v796 = vsub.s32 2, %v795
        %v797 = vrot.slane %v751, %v796
        %v798 = vlaneseq
        %v799 = vshrl.u32 %v798, 7
        %v800 = vsub.s32 3, %v799
        %v801 = vrot.slane %v751, %v800
        %v802 = vlaneseq
        %v803 = vshrl.u32 %v802, 7
        %v804 = vsub.s32 4, %v803
        %v805 = vrot.slane %v751, %v804
        %v806 = vlaneseq
        %v807 = vshrl.u32 %v806, 7
        %v808 = vsub.s32 5, %v807
        %v809 = vrot.slane %v751, %v808
        %v824 = vmul.f32 %v740, %v757
        %v825 = vmul.f32 %v741, %v761
        %v826 = vmul.f32 %v740, %v765
        %v827 = vmul.f32 %v741, %v769
        %v828 = vmul.f32 %v740, %v773
        %v829 = vmul.f32 %v741, %v777
        %v830 = vmul.f32 %v740, %v781
        %v831 = vmul.f32 %v741, %v785
        %v832 = vmul.f32 %v740, %v789
        %v833 = vmul.f32 %v741, %v793
        %v834 = vmul.f32 %v740, %v797
        %v835 = vmul.f32 %v741, %v801
        %v836 = vmul.f32 %v740, %v805
        %v837 = vmul.f32 %v741, %v809
        %v838 = vadd.f32 %v719, %v824
        %v839 = vadd.f32 %v720, %v825
        %v840 = vadd.f32 %v721, %v826
        %v841 = vadd.f32 %v722, %v827
        %v842 = vadd.f32 %v723, %v828
        %v843 = vadd.f32 %v724, %v829
        %v844 = vadd.f32 %v725, %v830
        %v845 = vadd.f32 %v726, %v831
        %v846 = vadd.f32 %v727, %v832
        %v847 = vadd.f32 %v728, %v833
        %v848 = vadd.f32 %v729, %v834
        %v849 = vadd.f32 %v730, %v835
        %v850 = vadd.f32 %v731, %v836
        %v851 = vadd.f32 %v732, %v837
        %852 = vrot.lane.b32.xlu0 %v370, 110
        %v853 = vpop.permute.xlu0 %852
        %854 = vrot.lane.b32.xlu0 %v371, 110
        %v855 = vpop.permute.xlu0 %854
        %856 = vrot.lane.b32.xlu0 %v372, 110
        %v857 = vpop.permute.xlu0 %856
        %vm858 = vcmask 900096
        %v859 = vsel %vm858, %v853, %v855
        %v860 = vsel %vm858, %v855, %v857
        %s863 = scalar_lea.vmem %s1, 5
        %v864 = vld [vmem:[%s863] ss:$8 sm:$0xf]
        %v865 = vld [vmem:[%s863] ss:$8 sm:$0xf0]
        %v866 = vor.u32 %v864, %v865
        %s867 = scalar_lea.vmem %s1, 69
        %v868 = vld [vmem:[%s867] ss:$8 sm:$0xf]
        %v869 = vld [vmem:[%s867] ss:$8 sm:$0x30]
        %v870 = vor.u32 %v868, %v869
        %v873 = vlaneseq
        %v874 = vshrl.u32 %v873, 7
        %v875 = vsub.s32 0, %v874
        %v876 = vrot.slane %v866, %v875
        %v877 = vlaneseq
        %v878 = vshrl.u32 %v877, 7
        %v879 = vsub.s32 1, %v878
        %v880 = vrot.slane %v866, %v879
        %v881 = vlaneseq
        %v882 = vshrl.u32 %v881, 7
        %v883 = vsub.s32 2, %v882
        %v884 = vrot.slane %v866, %v883
        %v885 = vlaneseq
        %v886 = vshrl.u32 %v885, 7
        %v887 = vsub.s32 3, %v886
        %v888 = vrot.slane %v866, %v887
        %v889 = vlaneseq
        %v890 = vshrl.u32 %v889, 7
        %v891 = vsub.s32 4, %v890
        %v892 = vrot.slane %v866, %v891
        %v893 = vlaneseq
        %v894 = vshrl.u32 %v893, 7
        %v895 = vsub.s32 5, %v894
        %v896 = vrot.slane %v866, %v895
        %v897 = vlaneseq
        %v898 = vshrl.u32 %v897, 7
        %v899 = vsub.s32 6, %v898
        %v900 = vrot.slane %v866, %v899
        %v901 = vlaneseq
        %v902 = vshrl.u32 %v901, 7
        %v903 = vsub.s32 7, %v902
        %v904 = vrot.slane %v866, %v903
        %v905 = vlaneseq
        %v906 = vshrl.u32 %v905, 7
        %v907 = vsub.s32 0, %v906
        %v908 = vrot.slane %v870, %v907
        %v909 = vlaneseq
        %v910 = vshrl.u32 %v909, 7
        %v911 = vsub.s32 1, %v910
        %v912 = vrot.slane %v870, %v911
        %v913 = vlaneseq
        %v914 = vshrl.u32 %v913, 7
        %v915 = vsub.s32 2, %v914
        %v916 = vrot.slane %v870, %v915
        %v917 = vlaneseq
        %v918 = vshrl.u32 %v917, 7
        %v919 = vsub.s32 3, %v918
        %v920 = vrot.slane %v870, %v919
        %v921 = vlaneseq
        %v922 = vshrl.u32 %v921, 7
        %v923 = vsub.s32 4, %v922
        %v924 = vrot.slane %v870, %v923
        %v925 = vlaneseq
        %v926 = vshrl.u32 %v925, 7
        %v927 = vsub.s32 5, %v926
        %v928 = vrot.slane %v870, %v927
        %v943 = vmul.f32 %v859, %v876
        %v944 = vmul.f32 %v860, %v880
        %v945 = vmul.f32 %v859, %v884
        %v946 = vmul.f32 %v860, %v888
        %v947 = vmul.f32 %v859, %v892
        %v948 = vmul.f32 %v860, %v896
        %v949 = vmul.f32 %v859, %v900
        %v950 = vmul.f32 %v860, %v904
        %v951 = vmul.f32 %v859, %v908
        %v952 = vmul.f32 %v860, %v912
        %v953 = vmul.f32 %v859, %v916
        %v954 = vmul.f32 %v860, %v920
        %v955 = vmul.f32 %v859, %v924
        %v956 = vmul.f32 %v860, %v928
        %v957 = vadd.f32 %v838, %v943
        %v958 = vadd.f32 %v839, %v944
        %v959 = vadd.f32 %v840, %v945
        %v960 = vadd.f32 %v841, %v946
        %v961 = vadd.f32 %v842, %v947
        %v962 = vadd.f32 %v843, %v948
        %v963 = vadd.f32 %v844, %v949
        %v964 = vadd.f32 %v845, %v950
        %v965 = vadd.f32 %v846, %v951
        %v966 = vadd.f32 %v847, %v952
        %v967 = vadd.f32 %v848, %v953
        %v968 = vadd.f32 %v849, %v954
        %v969 = vadd.f32 %v850, %v955
        %v970 = vadd.f32 %v851, %v956
        %971 = vrot.lane.b32.xlu0 %v370, 96
        %v972 = vpop.permute.xlu0 %971
        %973 = vrot.lane.b32.xlu0 %v371, 96
        %v974 = vpop.permute.xlu0 %973
        %975 = vrot.lane.b32.xlu0 %v372, 96
        %v976 = vpop.permute.xlu0 %975
        %vm977 = vcmask 785408
        %v978 = vsel %vm977, %v972, %v974
        %v979 = vsel %vm977, %v974, %v976
        %s982 = scalar_lea.vmem %s1, 6
        %v983 = vld [vmem:[%s982] ss:$8 sm:$0xf]
        %v984 = vld [vmem:[%s982] ss:$8 sm:$0xf0]
        %v985 = vor.u32 %v983, %v984
        %s986 = scalar_lea.vmem %s1, 70
        %v987 = vld [vmem:[%s986] ss:$8 sm:$0xf]
        %v988 = vld [vmem:[%s986] ss:$8 sm:$0x30]
        %v989 = vor.u32 %v987, %v988
        %v992 = vlaneseq
        %v993 = vshrl.u32 %v992, 7
        %v994 = vsub.s32 0, %v993
        %v995 = vrot.slane %v985, %v994
        %v996 = vlaneseq
        %v997 = vshrl.u32 %v996, 7
        %v998 = vsub.s32 1, %v997
        %v999 = vrot.slane %v985, %v998
        %v1000 = vlaneseq
        %v1001 = vshrl.u32 %v1000, 7
        %v1002 = vsub.s32 2, %v1001
        %v1003 = vrot.slane %v985, %v1002
        %v1004 = vlaneseq
        %v1005 = vshrl.u32 %v1004, 7
        %v1006 = vsub.s32 3, %v1005
        %v1007 = vrot.slane %v985, %v1006
        %v1008 = vlaneseq
        %v1009 = vshrl.u32 %v1008, 7
        %v1010 = vsub.s32 4, %v1009
        %v1011 = vrot.slane %v985, %v1010
        %v1012 = vlaneseq
        %v1013 = vshrl.u32 %v1012, 7
        %v1014 = vsub.s32 5, %v1013
        %v1015 = vrot.slane %v985, %v1014
        %v1016 = vlaneseq
        %v1017 = vshrl.u32 %v1016, 7
        %v1018 = vsub.s32 6, %v1017
        %v1019 = vrot.slane %v985, %v1018
        %v1020 = vlaneseq
        %v1021 = vshrl.u32 %v1020, 7
        %v1022 = vsub.s32 7, %v1021
        %v1023 = vrot.slane %v985, %v1022
        %v1024 = vlaneseq
        %v1025 = vshrl.u32 %v1024, 7
        %v1026 = vsub.s32 0, %v1025
        %v1027 = vrot.slane %v989, %v1026
        %v1028 = vlaneseq
        %v1029 = vshrl.u32 %v1028, 7
        %v1030 = vsub.s32 1, %v1029
        %v1031 = vrot.slane %v989, %v1030
        %v1032 = vlaneseq
        %v1033 = vshrl.u32 %v1032, 7
        %v1034 = vsub.s32 2, %v1033
        %v1035 = vrot.slane %v989, %v1034
        %v1036 = vlaneseq
        %v1037 = vshrl.u32 %v1036, 7
        %v1038 = vsub.s32 3, %v1037
        %v1039 = vrot.slane %v989, %v1038
        %v1040 = vlaneseq
        %v1041 = vshrl.u32 %v1040, 7
        %v1042 = vsub.s32 4, %v1041
        %v1043 = vrot.slane %v989, %v1042
        %v1044 = vlaneseq
        %v1045 = vshrl.u32 %v1044, 7
        %v1046 = vsub.s32 5, %v1045
        %v1047 = vrot.slane %v989, %v1046
        %v1062 = vmul.f32 %v978, %v995
        %v1063 = vmul.f32 %v979, %v999
        %v1064 = vmul.f32 %v978, %v1003
        %v1065 = vmul.f32 %v979, %v1007
        %v1066 = vmul.f32 %v978, %v1011
        %v1067 = vmul.f32 %v979, %v1015
        %v1068 = vmul.f32 %v978, %v1019
        %v1069 = vmul.f32 %v979, %v1023
        %v1070 = vmul.f32 %v978, %v1027
        %v1071 = vmul.f32 %v979, %v1031
        %v1072 = vmul.f32 %v978, %v1035
        %v1073 = vmul.f32 %v979, %v1039
        %v1074 = vmul.f32 %v978, %v1043
        %v1075 = vmul.f32 %v979, %v1047
        %v1076 = vadd.f32 %v957, %v1062
        %v1077 = vadd.f32 %v958, %v1063
        %v1078 = vadd.f32 %v959, %v1064
        %v1079 = vadd.f32 %v960, %v1065
        %v1080 = vadd.f32 %v961, %v1066
        %v1081 = vadd.f32 %v962, %v1067
        %v1082 = vadd.f32 %v963, %v1068
        %v1083 = vadd.f32 %v964, %v1069
        %v1084 = vadd.f32 %v965, %v1070
        %v1085 = vadd.f32 %v966, %v1071
        %v1086 = vadd.f32 %v967, %v1072
        %v1087 = vadd.f32 %v968, %v1073
        %v1088 = vadd.f32 %v969, %v1074
        %v1089 = vadd.f32 %v970, %v1075
        %1090 = vrot.lane.b32.xlu0 %v370, 95
        %v1091 = vpop.permute.xlu0 %1090
        %1092 = vrot.lane.b32.xlu0 %v371, 95
        %v1093 = vpop.permute.xlu0 %1092
        %1094 = vrot.lane.b32.xlu0 %v372, 95
        %v1095 = vpop.permute.xlu0 %1094
        %vm1096 = vcmask 777216
        %v1097 = vsel %vm1096, %v1091, %v1093
        %v1098 = vsel %vm1096, %v1093, %v1095
        %s1101 = scalar_lea.vmem %s1, 7
        %v1102 = vld [vmem:[%s1101] ss:$8 sm:$0xf]
        %v1103 = vld [vmem:[%s1101] ss:$8 sm:$0xf0]
        %v1104 = vor.u32 %v1102, %v1103
        %s1105 = scalar_lea.vmem %s1, 71
        %v1106 = vld [vmem:[%s1105] ss:$8 sm:$0xf]
        %v1107 = vld [vmem:[%s1105] ss:$8 sm:$0x30]
        %v1108 = vor.u32 %v1106, %v1107
        %v1111 = vlaneseq
        %v1112 = vshrl.u32 %v1111, 7
        %v1113 = vsub.s32 0, %v1112
        %v1114 = vrot.slane %v1104, %v1113
        %v1115 = vlaneseq
        %v1116 = vshrl.u32 %v1115, 7
        %v1117 = vsub.s32 1, %v1116
        %v1118 = vrot.slane %v1104, %v1117
        %v1119 = vlaneseq
        %v1120 = vshrl.u32 %v1119, 7
        %v1121 = vsub.s32 2, %v1120
        %v1122 = vrot.slane %v1104, %v1121
        %v1123 = vlaneseq
        %v1124 = vshrl.u32 %v1123, 7
        %v1125 = vsub.s32 3, %v1124
        %v1126 = vrot.slane %v1104, %v1125
        %v1127 = vlaneseq
        %v1128 = vshrl.u32 %v1127, 7
        %v1129 = vsub.s32 4, %v1128
        %v1130 = vrot.slane %v1104, %v1129
        %v1131 = vlaneseq
        %v1132 = vshrl.u32 %v1131, 7
        %v1133 = vsub.s32 5, %v1132
        %v1134 = vrot.slane %v1104, %v1133
        %v1135 = vlaneseq
        %v1136 = vshrl.u32 %v1135, 7
        %v1137 = vsub.s32 6, %v1136
        %v1138 = vrot.slane %v1104, %v1137
        %v1139 = vlaneseq
        %v1140 = vshrl.u32 %v1139, 7
        %v1141 = vsub.s32 7, %v1140
        %v1142 = vrot.slane %v1104, %v1141
        %v1143 = vlaneseq
        %v1144 = vshrl.u32 %v1143, 7
        %v1145 = vsub.s32 0, %v1144
        %v1146 = vrot.slane %v1108, %v1145
        %v1147 = vlaneseq
        %v1148 = vshrl.u32 %v1147, 7
        %v1149 = vsub.s32 1, %v1148
        %v1150 = vrot.slane %v1108, %v1149
        %v1151 = vlaneseq
        %v1152 = vshrl.u32 %v1151, 7
        %v1153 = vsub.s32 2, %v1152
        %v1154 = vrot.slane %v1108, %v1153
        %v1155 = vlaneseq
        %v1156 = vshrl.u32 %v1155, 7
        %v1157 = vsub.s32 3, %v1156
        %v1158 = vrot.slane %v1108, %v1157
        %v1159 = vlaneseq
        %v1160 = vshrl.u32 %v1159, 7
        %v1161 = vsub.s32 4, %v1160
        %v1162 = vrot.slane %v1108, %v1161
        %v1163 = vlaneseq
        %v1164 = vshrl.u32 %v1163, 7
        %v1165 = vsub.s32 5, %v1164
        %v1166 = vrot.slane %v1108, %v1165
        %v1181 = vmul.f32 %v1097, %v1114
        %v1182 = vmul.f32 %v1098, %v1118
        %v1183 = vmul.f32 %v1097, %v1122
        %v1184 = vmul.f32 %v1098, %v1126
        %v1185 = vmul.f32 %v1097, %v1130
        %v1186 = vmul.f32 %v1098, %v1134
        %v1187 = vmul.f32 %v1097, %v1138
        %v1188 = vmul.f32 %v1098, %v1142
        %v1189 = vmul.f32 %v1097, %v1146
        %v1190 = vmul.f32 %v1098, %v1150
        %v1191 = vmul.f32 %v1097, %v1154
        %v1192 = vmul.f32 %v1098, %v1158
        %v1193 = vmul.f32 %v1097, %v1162
        %v1194 = vmul.f32 %v1098, %v1166
        %v1195 = vadd.f32 %v1076, %v1181
        %v1196 = vadd.f32 %v1077, %v1182
        %v1197 = vadd.f32 %v1078, %v1183
        %v1198 = vadd.f32 %v1079, %v1184
        %v1199 = vadd.f32 %v1080, %v1185
        %v1200 = vadd.f32 %v1081, %v1186
        %v1201 = vadd.f32 %v1082, %v1187
        %v1202 = vadd.f32 %v1083, %v1188
        %v1203 = vadd.f32 %v1084, %v1189
        %v1204 = vadd.f32 %v1085, %v1190
        %v1205 = vadd.f32 %v1086, %v1191
        %v1206 = vadd.f32 %v1087, %v1192
        %v1207 = vadd.f32 %v1088, %v1193
        %v1208 = vadd.f32 %v1089, %v1194
        %1209 = vrot.lane.b32.xlu0 %v370, 94
        %v1210 = vpop.permute.xlu0 %1209
        %1211 = vrot.lane.b32.xlu0 %v371, 94
        %v1212 = vpop.permute.xlu0 %1211
        %1213 = vrot.lane.b32.xlu0 %v372, 94
        %v1214 = vpop.permute.xlu0 %1213
        %vm1215 = vcmask 769024
        %v1216 = vsel %vm1215, %v1210, %v1212
        %v1217 = vsel %vm1215, %v1212, %v1214
        %s1220 = scalar_lea.vmem %s1, 112
        %v1221 = vld [vmem:[%s1220] ss:$8 sm:$0xf]
        %v1222 = vld [vmem:[%s1220] ss:$8 sm:$0xf0]
        %v1223 = vor.u32 %v1221, %v1222
        %s1224 = scalar_lea.vmem %s1, 176
        %v1225 = vld [vmem:[%s1224] ss:$8 sm:$0xf]
        %v1226 = vld [vmem:[%s1224] ss:$8 sm:$0x30]
        %v1227 = vor.u32 %v1225, %v1226
        %v1230 = vlaneseq
        %v1231 = vshrl.u32 %v1230, 7
        %v1232 = vsub.s32 0, %v1231
        %v1233 = vrot.slane %v1223, %v1232
        %v1234 = vlaneseq
        %v1235 = vshrl.u32 %v1234, 7
        %v1236 = vsub.s32 1, %v1235
        %v1237 = vrot.slane %v1223, %v1236
        %v1238 = vlaneseq
        %v1239 = vshrl.u32 %v1238, 7
        %v1240 = vsub.s32 2, %v1239
        %v1241 = vrot.slane %v1223, %v1240
        %v1242 = vlaneseq
        %v1243 = vshrl.u32 %v1242, 7
        %v1244 = vsub.s32 3, %v1243
        %v1245 = vrot.slane %v1223, %v1244
        %v1246 = vlaneseq
        %v1247 = vshrl.u32 %v1246, 7
        %v1248 = vsub.s32 4, %v1247
        %v1249 = vrot.slane %v1223, %v1248
        %v1250 = vlaneseq
        %v1251 = vshrl.u32 %v1250, 7
        %v1252 = vsub.s32 5, %v1251
        %v1253 = vrot.slane %v1223, %v1252
        %v1254 = vlaneseq
        %v1255 = vshrl.u32 %v1254, 7
        %v1256 = vsub.s32 6, %v1255
        %v1257 = vrot.slane %v1223, %v1256
        %v1258 = vlaneseq
        %v1259 = vshrl.u32 %v1258, 7
        %v1260 = vsub.s32 7, %v1259
        %v1261 = vrot.slane %v1223, %v1260
        %v1262 = vlaneseq
        %v1263 = vshrl.u32 %v1262, 7
        %v1264 = vsub.s32 0, %v1263
        %v1265 = vrot.slane %v1227, %v1264
        %v1266 = vlaneseq
        %v1267 = vshrl.u32 %v1266, 7
        %v1268 = vsub.s32 1, %v1267
        %v1269 = vrot.slane %v1227, %v1268
        %v1270 = vlaneseq
        %v1271 = vshrl.u32 %v1270, 7
        %v1272 = vsub.s32 2, %v1271
        %v1273 = vrot.slane %v1227, %v1272
        %v1274 = vlaneseq
        %v1275 = vshrl.u32 %v1274, 7
        %v1276 = vsub.s32 3, %v1275
        %v1277 = vrot.slane %v1227, %v1276
        %v1278 = vlaneseq
        %v1279 = vshrl.u32 %v1278, 7
        %v1280 = vsub.s32 4, %v1279
        %v1281 = vrot.slane %v1227, %v1280
        %v1282 = vlaneseq
        %v1283 = vshrl.u32 %v1282, 7
        %v1284 = vsub.s32 5, %v1283
        %v1285 = vrot.slane %v1227, %v1284
        %v1300 = vmul.f32 %v1216, %v1233
        %v1301 = vmul.f32 %v1217, %v1237
        %v1302 = vmul.f32 %v1216, %v1241
        %v1303 = vmul.f32 %v1217, %v1245
        %v1304 = vmul.f32 %v1216, %v1249
        %v1305 = vmul.f32 %v1217, %v1253
        %v1306 = vmul.f32 %v1216, %v1257
        %v1307 = vmul.f32 %v1217, %v1261
        %v1308 = vmul.f32 %v1216, %v1265
        %v1309 = vmul.f32 %v1217, %v1269
        %v1310 = vmul.f32 %v1216, %v1273
        %v1311 = vmul.f32 %v1217, %v1277
        %v1312 = vmul.f32 %v1216, %v1281
        %v1313 = vmul.f32 %v1217, %v1285
        %v1314 = vadd.f32 %v1195, %v1300
        %v1315 = vadd.f32 %v1196, %v1301
        %v1316 = vadd.f32 %v1197, %v1302
        %v1317 = vadd.f32 %v1198, %v1303
        %v1318 = vadd.f32 %v1199, %v1304
        %v1319 = vadd.f32 %v1200, %v1305
        %v1320 = vadd.f32 %v1201, %v1306
        %v1321 = vadd.f32 %v1202, %v1307
        %v1322 = vadd.f32 %v1203, %v1308
        %v1323 = vadd.f32 %v1204, %v1309
        %v1324 = vadd.f32 %v1205, %v1310
        %v1325 = vadd.f32 %v1206, %v1311
        %v1326 = vadd.f32 %v1207, %v1312
        %v1327 = vadd.f32 %v1208, %v1313
        %v1328 = vld [vmem:[%s2] sm:$0xff]
        %v1329 = vld [vmem:[%s2 + $0x8] sm:$0x3f]
        %v1332 = vlaneseq
        %v1333 = vshrl.u32 %v1332, 7
        %v1334 = vsub.s32 0, %v1333
        %v1335 = vrot.slane %v1328, %v1334
        %v1336 = vlaneseq
        %v1337 = vshrl.u32 %v1336, 7
        %v1338 = vsub.s32 1, %v1337
        %v1339 = vrot.slane %v1328, %v1338
        %v1340 = vlaneseq
        %v1341 = vshrl.u32 %v1340, 7
        %v1342 = vsub.s32 2, %v1341
        %v1343 = vrot.slane %v1328, %v1342
        %v1344 = vlaneseq
        %v1345 = vshrl.u32 %v1344, 7
        %v1346 = vsub.s32 3, %v1345
        %v1347 = vrot.slane %v1328, %v1346
        %v1348 = vlaneseq
        %v1349 = vshrl.u32 %v1348, 7
        %v1350 = vsub.s32 4, %v1349
        %v1351 = vrot.slane %v1328, %v1350
        %v1352 = vlaneseq
        %v1353 = vshrl.u32 %v1352, 7
        %v1354 = vsub.s32 5, %v1353
        %v1355 = vrot.slane %v1328, %v1354
        %v1356 = vlaneseq
        %v1357 = vshrl.u32 %v1356, 7
        %v1358 = vsub.s32 6, %v1357
        %v1359 = vrot.slane %v1328, %v1358
        %v1360 = vlaneseq
        %v1361 = vshrl.u32 %v1360, 7
        %v1362 = vsub.s32 7, %v1361
        %v1363 = vrot.slane %v1328, %v1362
        %v1364 = vlaneseq
        %v1365 = vshrl.u32 %v1364, 7
        %v1366 = vsub.s32 0, %v1365
        %v1367 = vrot.slane %v1329, %v1366
        %v1368 = vlaneseq
        %v1369 = vshrl.u32 %v1368, 7
        %v1370 = vsub.s32 1, %v1369
        %v1371 = vrot.slane %v1329, %v1370
        %v1372 = vlaneseq
        %v1373 = vshrl.u32 %v1372, 7
        %v1374 = vsub.s32 2, %v1373
        %v1375 = vrot.slane %v1329, %v1374
        %v1376 = vlaneseq
        %v1377 = vshrl.u32 %v1376, 7
        %v1378 = vsub.s32 3, %v1377
        %v1379 = vrot.slane %v1329, %v1378
        %v1380 = vlaneseq
        %v1381 = vshrl.u32 %v1380, 7
        %v1382 = vsub.s32 4, %v1381
        %v1383 = vrot.slane %v1329, %v1382
        %v1384 = vlaneseq
        %v1385 = vshrl.u32 %v1384, 7
        %v1386 = vsub.s32 5, %v1385
        %v1387 = vrot.slane %v1329, %v1386
        %v1402 = vadd.f32 %v1314, %v1335
        %v1403 = vadd.f32 %v1315, %v1339
        %v1404 = vadd.f32 %v1316, %v1343
        %v1405 = vadd.f32 %v1317, %v1347
        %v1406 = vadd.f32 %v1318, %v1351
        %v1407 = vadd.f32 %v1319, %v1355
        %v1408 = vadd.f32 %v1320, %v1359
        %v1409 = vadd.f32 %v1321, %v1363
        %v1410 = vadd.f32 %v1322, %v1367
        %v1411 = vadd.f32 %v1323, %v1371
        %v1412 = vadd.f32 %v1324, %v1375
        %v1413 = vadd.f32 %v1325, %v1379
        %v1414 = vadd.f32 %v1326, %v1383
        %v1415 = vadd.f32 %v1327, %v1387
        %v1416 = vmax.f32 %v1402, 0.0
        %v1417 = vmax.f32 %v1403, 0.0
        %v1418 = vmax.f32 %v1404, 0.0
        %v1419 = vmax.f32 %v1405, 0.0
        %v1420 = vmax.f32 %v1406, 0.0
        %v1421 = vmax.f32 %v1407, 0.0
        %v1422 = vmax.f32 %v1408, 0.0
        %v1423 = vmax.f32 %v1409, 0.0
        %v1424 = vmax.f32 %v1410, 0.0
        %v1425 = vmax.f32 %v1411, 0.0
        %v1426 = vmax.f32 %v1412, 0.0
        %v1427 = vmax.f32 %v1413, 0.0
        %v1428 = vmax.f32 %v1414, 0.0
        %v1429 = vmax.f32 %v1415, 0.0
        %1444 = vrot.lane.b32.xlu0 %v1416, 112
        %v1445 = vpop.permute.xlu0 %1444
        %1446 = vrot.lane.b32.xlu0 %v1417, 112
        %v1447 = vpop.permute.xlu0 %1446
        %1448 = vrot.lane.b32.xlu0 %v1418, 112
        %v1449 = vpop.permute.xlu0 %1448
        %1450 = vrot.lane.b32.xlu0 %v1419, 112
        %v1451 = vpop.permute.xlu0 %1450
        %1452 = vrot.lane.b32.xlu0 %v1420, 112
        %v1453 = vpop.permute.xlu0 %1452
        %1454 = vrot.lane.b32.xlu0 %v1421, 112
        %v1455 = vpop.permute.xlu0 %1454
        %1456 = vrot.lane.b32.xlu0 %v1422, 112
        %v1457 = vpop.permute.xlu0 %1456
        %1458 = vrot.lane.b32.xlu0 %v1423, 112
        %v1459 = vpop.permute.xlu0 %1458
        %1460 = vrot.lane.b32.xlu0 %v1424, 112
        %v1461 = vpop.permute.xlu0 %1460
        %1462 = vrot.lane.b32.xlu0 %v1425, 112
        %v1463 = vpop.permute.xlu0 %1462
        %1464 = vrot.lane.b32.xlu0 %v1426, 112
        %v1465 = vpop.permute.xlu0 %1464
        %1466 = vrot.lane.b32.xlu0 %v1427, 112
        %v1467 = vpop.permute.xlu0 %1466
        %1468 = vrot.lane.b32.xlu0 %v1428, 112
        %v1469 = vpop.permute.xlu0 %1468
        %1470 = vrot.lane.b32.xlu0 %v1429, 112
        %v1471 = vpop.permute.xlu0 %1470
        %v1472 = vsel %vm620, %v1445, %v1447
        %v1473 = vsel %vm620, %v1447, %v1449
        %v1474 = vsel %vm620, %v1449, %v1451
        %v1475 = vsel %vm620, %v1451, %v1453
        %v1476 = vsel %vm620, %v1453, %v1455
        %v1477 = vsel %vm620, %v1455, %v1457
        %v1478 = vsel %vm620, %v1457, %v1459
        %v1479 = vsel %vm620, %v1459, %v1461
        %v1480 = vsel %vm620, %v1461, %v1463
        %v1481 = vsel %vm620, %v1463, %v1465
        %v1482 = vsel %vm620, %v1465, %v1467
        %v1483 = vsel %vm620, %v1467, %v1469
        %v1484 = vsel %vm620, %v1469, %v1471
        %v1499 = vmax.f32 %v1416, %v1472
        %v1500 = vmax.f32 %v1417, %v1473
        %v1501 = vmax.f32 %v1418, %v1474
        %v1502 = vmax.f32 %v1419, %v1475
        %v1503 = vmax.f32 %v1420, %v1476
        %v1504 = vmax.f32 %v1421, %v1477
        %v1505 = vmax.f32 %v1422, %v1478
        %v1506 = vmax.f32 %v1423, %v1479
        %v1507 = vmax.f32 %v1424, %v1480
        %v1508 = vmax.f32 %v1425, %v1481
        %v1509 = vmax.f32 %v1426, %v1482
        %v1510 = vmax.f32 %v1427, %v1483
        %v1511 = vmax.f32 %v1428, %v1484
        %v1512 = vmax.f32 %v1429, %v1471
        %1527 = vrot.lane.b32.xlu0 %v1499, 127
        %v1528 = vpop.permute.xlu0 %1527
        %1529 = vrot.lane.b32.xlu0 %v1500, 127
        %v1530 = vpop.permute.xlu0 %1529
        %1531 = vrot.lane.b32.xlu0 %v1501, 127
        %v1532 = vpop.permute.xlu0 %1531
        %1533 = vrot.lane.b32.xlu0 %v1502, 127
        %v1534 = vpop.permute.xlu0 %1533
        %1535 = vrot.lane.b32.xlu0 %v1503, 127
        %v1536 = vpop.permute.xlu0 %1535
        %1537 = vrot.lane.b32.xlu0 %v1504, 127
        %v1538 = vpop.permute.xlu0 %1537
        %1539 = vrot.lane.b32.xlu0 %v1505, 127
        %v1540 = vpop.permute.xlu0 %1539
        %1541 = vrot.lane.b32.xlu0 %v1506, 127
        %v1542 = vpop.permute.xlu0 %1541
        %1543 = vrot.lane.b32.xlu0 %v1507, 127
        %v1544 = vpop.permute.xlu0 %1543
        %1545 = vrot.lane.b32.xlu0 %v1508, 127
        %v1546 = vpop.permute.xlu0 %1545
        %1547 = vrot.lane.b32.xlu0 %v1509, 127
        %v1548 = vpop.permute.xlu0 %1547
        %1549 = vrot.lane.b32.xlu0 %v1510, 127
        %v1550 = vpop.permute.xlu0 %1549
        %1551 = vrot.lane.b32.xlu0 %v1511, 127
        %v1552 = vpop.permute.xlu0 %1551
        %1553 = vrot.lane.b32.xlu0 %v1512, 127
        %v1554 = vpop.permute.xlu0 %1553
        %v1555 = vsel %vm382, %v1528, %v1530
        %v1556 = vsel %vm382, %v1530, %v1532
        %v1557 = vsel %vm382, %v1532, %v1534
        %v1558 = vsel %vm382, %v1534, %v1536
        %v1559 = vsel %vm382, %v1536, %v1538
        %v1560 = vsel %vm382, %v1538, %v1540
        %v1561 = vsel %vm382, %v1540, %v1542
        %v1562 = vsel %vm382, %v1542, %v1544
        %v1563 = vsel %vm382, %v1544, %v1546
        %v1564 = vsel %vm382, %v1546, %v1548
        %v1565 = vsel %vm382, %v1548, %v1550
        %v1566 = vsel %vm382, %v1550, %v1552
        %v1567 = vsel %vm382, %v1552, %v1554
        %v1582 = vmax.f32 %v1499, %v1555
        %v1583 = vmax.f32 %v1500, %v1556
        %v1584 = vmax.f32 %v1501, %v1557
        %v1585 = vmax.f32 %v1502, %v1558
        %v1586 = vmax.f32 %v1503, %v1559
        %v1587 = vmax.f32 %v1504, %v1560
        %v1588 = vmax.f32 %v1505, %v1561
        %v1589 = vmax.f32 %v1506, %v1562
        %v1590 = vmax.f32 %v1507, %v1563
        %v1591 = vmax.f32 %v1508, %v1564
        %v1592 = vmax.f32 %v1509, %v1565
        %v1593 = vmax.f32 %v1510, %v1566
        %v1594 = vmax.f32 %v1511, %v1567
        %v1595 = vmax.f32 %v1512, %v1554
        %v1596 = vld [vmem:[%s3] sm:$0xff]
        %v1597 = vld [vmem:[%s3 + $0x8] sm:$0xff]
        %v1598 = vld [vmem:[%s3 + $0x10] sm:$0xff]
        %v1599 = vld [vmem:[%s3 + $0x18] sm:$0xff]
        %v1600 = vld [vmem:[%s3 + $0x20] sm:$0xff]
        %v1601 = vld [vmem:[%s3 + $0x28] sm:$0xff]
        %v1602 = vld [vmem:[%s3 + $0x30] sm:$0xff]
        %v1603 = vld [vmem:[%s3 + $0x38] sm:$0xff]
        %v1604 = vld [vmem:[%s3 + $0x40] sm:$0xff]
        %v1605 = vld [vmem:[%s3 + $0x48] sm:$0xff]
        %v1606 = vld [vmem:[%s3 + $0x50] sm:$0xff]
        %v1607 = vld [vmem:[%s3 + $0x58] sm:$0xff]
        %v1608 = vld [vmem:[%s3 + $0x60] sm:$0xff]
        %v1609 = vld [vmem:[%s3 + $0x68] sm:$0xff]
        %v1610 = vld [vmem:[%s3 + $0x70] sm:$0xff]
        %v1611 = vld [vmem:[%s3 + $0x78] sm:$0xff]
        %v1612 = vld [vmem:[%s3 + $0x80] sm:$0xff]
        %v1613 = vld [vmem:[%s3 + $0x88] sm:$0xff]
        %v1614 = vld [vmem:[%s3 + $0x90] sm:$0xff]
        %v1615 = vld [vmem:[%s3 + $0x98] sm:$0xff]
        %v1616 = vld [vmem:[%s3 + $0xa0] sm:$0xff]
        %v1617 = vld [vmem:[%s3 + $0xa8] sm:$0xff]
        %v1618 = vld [vmem:[%s3 + $0xb0] sm:$0xff]
        %v1619 = vld [vmem:[%s3 + $0xb8] sm:$0xff]
        %v1620 = vld [vmem:[%s3 + $0xc0] sm:$0xff]
        %v1621 = vld [vmem:[%s3 + $0xc8] sm:$0xff]
        %v1622 = vld [vmem:[%s3 + $0xd0] sm:$0xff]
        %v1623 = vld [vmem:[%s3 + $0xd8] sm:$0xff]
        %v1624 = vld [vmem:[%s3 + $0xe0] sm:$0xff]
        %v1625 = vld [vmem:[%s3 + $0xe8] sm:$0xff]
        %v1626 = vld [vmem:[%s3 + $0xf0] sm:$0xff]
        %v1627 = vld [vmem:[%s3 + $0xf8] sm:$0xff]
        %v1628 = vld [vmem:[%s3 + $0x100] sm:$0xff]
        %v1629 = vld [vmem:[%s3 + $0x108] sm:$0xff]
        %v1630 = vld [vmem:[%s3 + $0x110] sm:$0xff]
        %v1631 = vld [vmem:[%s3 + $0x118] sm:$0xff]
        %v1632 = vld [vmem:[%s3 + $0x120] sm:$0xff]
        %v1633 = vld [vmem:[%s3 + $0x128] sm:$0xff]
        %v1634 = vld [vmem:[%s3 + $0x130] sm:$0xff]
        %v1635 = vld [vmem:[%s3 + $0x138] sm:$0xff]
        %v1636 = vld [vmem:[%s3 + $0x140] sm:$0xff]
        %v1637 = vld [vmem:[%s3 + $0x148] sm:$0xff]
        %v1638 = vld [vmem:[%s3 + $0x150] sm:$0xff]
        %v1639 = vld [vmem:[%s3 + $0x158] sm:$0xff]
        %v1640 = vld [vmem:[%s3 + $0x160] sm:$0xff]
        %v1641 = vld [vmem:[%s3 + $0x168] sm:$0xff]
        %v1642 = vld [vmem:[%s3 + $0x170] sm:$0xff]
        %v1643 = vld [vmem:[%s3 + $0x178] sm:$0xff]
        %v1644 = vld [vmem:[%s3 + $0x180] sm:$0xff]
        %v1645 = vld [vmem:[%s3 + $0x188] sm:$0xff]
        %v1646 = vld [vmem:[%s3 + $0x190] sm:$0xff]
        %v1647 = vld [vmem:[%s3 + $0x198] sm:$0xff]
        %v1648 = vld [vmem:[%s3 + $0x1a0] sm:$0xff]
        %v1649 = vld [vmem:[%s3 + $0x1a8] sm:$0xff]
        %v1650 = vld [vmem:[%s3 + $0x1b0] sm:$0xff]
        %v1651 = vld [vmem:[%s3 + $0x1b8] sm:$0xff]
        %v1652 = vld [vmem:[%s3 + $0x1c0] sm:$0xff]
        %v1653 = vld [vmem:[%s3 + $0x1c8] sm:$0xff]
        %v1654 = vld [vmem:[%s3 + $0x1d0] sm:$0xff]
        %v1655 = vld [vmem:[%s3 + $0x1d8] sm:$0xff]
        %v1656 = vld [vmem:[%s3 + $0x1e0] sm:$0xff]
        %v1657 = vld [vmem:[%s3 + $0x1e8] sm:$0xff]
        %v1658 = vld [vmem:[%s3 + $0x1f0] sm:$0xff]
        %v1659 = vld [vmem:[%s3 + $0x1f8] sm:$0xff]
        %v1660 = vld [vmem:[%s3 + $0x200] sm:$0xff]
        %v1661 = vld [vmem:[%s3 + $0x208] sm:$0xff]
        %v1662 = vld [vmem:[%s3 + $0x210] sm:$0xff]
        %v1663 = vld [vmem:[%s3 + $0x218] sm:$0xff]
        %v1664 = vld [vmem:[%s3 + $0x220] sm:$0xff]
        %v1665 = vld [vmem:[%s3 + $0x228] sm:$0xff]
        %v1666 = vld [vmem:[%s3 + $0x230] sm:$0xff]
        %v1667 = vld [vmem:[%s3 + $0x238] sm:$0xff]
        %v1668 = vld [vmem:[%s3 + $0x240] sm:$0xff]
        %v1669 = vld [vmem:[%s3 + $0x248] sm:$0xff]
        %v1670 = vld [vmem:[%s3 + $0x250] sm:$0xff]
        %v1671 = vld [vmem:[%s3 + $0x258] sm:$0xff]
        %v1672 = vld [vmem:[%s3 + $0x260] sm:$0xff]
        %v1673 = vld [vmem:[%s3 + $0x268] sm:$0xff]
        %v1674 = vld [vmem:[%s3 + $0x270] sm:$0xff]
        %v1675 = vld [vmem:[%s3 + $0x278] sm:$0xff]
        %v1676 = vld [vmem:[%s3 + $0x280] sm:$0xff]
        %v1677 = vld [vmem:[%s3 + $0x288] sm:$0xff]
        %v1678 = vld [vmem:[%s3 + $0x290] sm:$0xff]
        %v1679 = vld [vmem:[%s3 + $0x298] sm:$0xff]
        %v1680 = vld [vmem:[%s3 + $0x2a0] sm:$0xff]
        %v1681 = vld [vmem:[%s3 + $0x2a8] sm:$0xff]
        %v1682 = vld [vmem:[%s3 + $0x2b0] sm:$0xff]
        %v1683 = vld [vmem:[%s3 + $0x2b8] sm:$0xff]
        %v1684 = vld [vmem:[%s3 + $0x2c0] sm:$0xff]
        %v1685 = vld [vmem:[%s3 + $0x2c8] sm:$0xff]
        %v1686 = vld [vmem:[%s3 + $0x2d0] sm:$0xff]
        %v1687 = vld [vmem:[%s3 + $0x2d8] sm:$0xff]
        %v1688 = vld [vmem:[%s3 + $0x2e0] sm:$0xff]
        %v1689 = vld [vmem:[%s3 + $0x2e8] sm:$0xff]
        %v1690 = vld [vmem:[%s3 + $0x2f0] sm:$0xff]
        %v1691 = vld [vmem:[%s3 + $0x2f8] sm:$0xff]
        %v1692 = vld [vmem:[%s3 + $0x300] sm:$0xff]
        %v1693 = vld [vmem:[%s3 + $0x308] sm:$0xff]
        %v1694 = vld [vmem:[%s3 + $0x310] sm:$0xff]
        %v1695 = vld [vmem:[%s3 + $0x318] sm:$0xff]
        %v1696 = vld [vmem:[%s3 + $0x320] sm:$0xff]
        %v1697 = vld [vmem:[%s3 + $0x328] sm:$0xff]
        %v1698 = vld [vmem:[%s3 + $0x330] sm:$0xff]
        %v1699 = vld [vmem:[%s3 + $0x338] sm:$0xff]
        %v1700 = vld [vmem:[%s3 + $0x340] sm:$0xff]
        %v1701 = vld [vmem:[%s3 + $0x348] sm:$0xff]
        %v1702 = vld [vmem:[%s3 + $0x350] sm:$0xff]
        %v1703 = vld [vmem:[%s3 + $0x358] sm:$0xff]
        %v1704 = vld [vmem:[%s3 + $0x360] sm:$0xff]
        %v1705 = vld [vmem:[%s3 + $0x368] sm:$0xff]
        %v1706 = vld [vmem:[%s3 + $0x370] sm:$0xff]
        %v1707 = vld [vmem:[%s3 + $0x378] sm:$0xff]
        %v1708 = vld [vmem:[%s3 + $0x380] sm:$0xff]
        %v1709 = vld [vmem:[%s3 + $0x388] sm:$0xff]
        %v1710 = vld [vmem:[%s3 + $0x390] sm:$0xff]
        %v1711 = vld [vmem:[%s3 + $0x398] sm:$0xff]
        %v1712 = vld [vmem:[%s3 + $0x3a0] sm:$0xff]
        %v1713 = vld [vmem:[%s3 + $0x3a8] sm:$0xff]
        %v1714 = vld [vmem:[%s3 + $0x3b0] sm:$0xff]
        %v1715 = vld [vmem:[%s3 + $0x3b8] sm:$0xff]
        %v1716 = vld [vmem:[%s3 + $0x3c0] sm:$0xff]
        %v1717 = vld [vmem:[%s3 + $0x3c8] sm:$0xff]
        %v1718 = vld [vmem:[%s3 + $0x3d0] sm:$0xff]
        %v1719 = vld [vmem:[%s3 + $0x3d8] sm:$0xff]
        %v1720 = vld [vmem:[%s3 + $0x3e0] sm:$0xff]
        %v1721 = vld [vmem:[%s3 + $0x3e8] sm:$0xff]
        %v1722 = vld [vmem:[%s3 + $0x3f0] sm:$0xff]
        %v1723 = vld [vmem:[%s3 + $0x3f8] sm:$0xff]
        %v1724 = vld [vmem:[%s3 + $0x400] sm:$0xff]
        %v1725 = vld [vmem:[%s3 + $0x408] sm:$0xff]
        %v1726 = vld [vmem:[%s3 + $0x410] sm:$0xff]
        %v1727 = vld [vmem:[%s3 + $0x418] sm:$0xff]
        %v1728 = vld [vmem:[%s3 + $0x420] sm:$0xff]
        %v1729 = vld [vmem:[%s3 + $0x428] sm:$0xff]
        %v1730 = vld [vmem:[%s3 + $0x430] sm:$0xff]
        %v1731 = vld [vmem:[%s3 + $0x438] sm:$0xff]
        %v1732 = vld [vmem:[%s3 + $0x440] sm:$0xff]
        %v1733 = vld [vmem:[%s3 + $0x448] sm:$0xff]
        %v1734 = vld [vmem:[%s3 + $0x450] sm:$0xff]
        %v1735 = vld [vmem:[%s3 + $0x458] sm:$0xff]
        %v1736 = vld [vmem:[%s3 + $0x460] sm:$0xff]
        %v1737 = vld [vmem:[%s3 + $0x468] sm:$0xff]
        %v1738 = vld [vmem:[%s3 + $0x470] sm:$0xff]
        %v1739 = vld [vmem:[%s3 + $0x478] sm:$0xff]
        %v1740 = vld [vmem:[%s3 + $0x480] sm:$0xff]
        %v1741 = vld [vmem:[%s3 + $0x488] sm:$0xff]
        %v1742 = vld [vmem:[%s3 + $0x490] sm:$0xff]
        %v1743 = vld [vmem:[%s3 + $0x498] sm:$0xff]
        %v1744 = vld [vmem:[%s3 + $0x4a0] sm:$0xff]
        %v1745 = vld [vmem:[%s3 + $0x4a8] sm:$0xff]
        %v1746 = vld [vmem:[%s3 + $0x4b0] sm:$0xff]
        %v1747 = vld [vmem:[%s3 + $0x4b8] sm:$0xff]
        %v1748 = vld [vmem:[%s3 + $0x4c0] sm:$0xff]
        %v1749 = vld [vmem:[%s3 + $0x4c8] sm:$0xff]
        %v1750 = vld [vmem:[%s3 + $0x4d0] sm:$0xff]
        %v1751 = vld [vmem:[%s3 + $0x4d8] sm:$0xff]
        %v1752 = vld [vmem:[%s3 + $0x4e0] sm:$0xff]
        %v1753 = vld [vmem:[%s3 + $0x4e8] sm:$0xff]
        %v1754 = vld [vmem:[%s3 + $0x4f0] sm:$0xff]
        %v1755 = vld [vmem:[%s3 + $0x4f8] sm:$0xff]
        %v1756 = vld [vmem:[%s3 + $0x500] sm:$0xff]
        %v1757 = vld [vmem:[%s3 + $0x508] sm:$0xff]
        %v1758 = vld [vmem:[%s3 + $0x510] sm:$0xff]
        %v1759 = vld [vmem:[%s3 + $0x518] sm:$0xff]
        %v1760 = vld [vmem:[%s3 + $0x520] sm:$0xff]
        %v1761 = vld [vmem:[%s3 + $0x528] sm:$0xff]
        %v1762 = vld [vmem:[%s3 + $0x530] sm:$0xff]
        %v1763 = vld [vmem:[%s3 + $0x538] sm:$0xff]
        %v1764 = vld [vmem:[%s3 + $0x540] sm:$0xff]
        %v1765 = vld [vmem:[%s3 + $0x548] sm:$0xff]
        %v1766 = vld [vmem:[%s3 + $0x550] sm:$0xff]
        %v1767 = vld [vmem:[%s3 + $0x558] sm:$0xff]
        %v1768 = vld [vmem:[%s3 + $0x560] sm:$0xff]
        %v1769 = vld [vmem:[%s3 + $0x568] sm:$0xff]
        %v1770 = vld [vmem:[%s3 + $0x570] sm:$0xff]
        %v1771 = vld [vmem:[%s3 + $0x578] sm:$0xff]
        %v1772 = vld [vmem:[%s3 + $0x580] sm:$0xff]
        %v1773 = vld [vmem:[%s3 + $0x588] sm:$0xff]
        %v1774 = vld [vmem:[%s3 + $0x590] sm:$0xff]
        %v1775 = vld [vmem:[%s3 + $0x598] sm:$0xff]
        %v1776 = vld [vmem:[%s3 + $0x5a0] sm:$0xff]
        %v1777 = vld [vmem:[%s3 + $0x5a8] sm:$0xff]
        %v1778 = vld [vmem:[%s3 + $0x5b0] sm:$0xff]
        %v1779 = vld [vmem:[%s3 + $0x5b8] sm:$0xff]
        %v1780 = vld [vmem:[%s3 + $0x5c0] sm:$0xff]
        %v1781 = vld [vmem:[%s3 + $0x5c8] sm:$0xff]
        %v1782 = vld [vmem:[%s3 + $0x5d0] sm:$0xff]
        %v1783 = vld [vmem:[%s3 + $0x5d8] sm:$0xff]
        %v1784 = vld [vmem:[%s3 + $0x5e0] sm:$0xff]
        %v1785 = vld [vmem:[%s3 + $0x5e8] sm:$0xff]
        %v1786 = vld [vmem:[%s3 + $0x5f0] sm:$0xff]
        %v1787 = vld [vmem:[%s3 + $0x5f8] sm:$0xff]
        %v1788 = vld [vmem:[%s3 + $0x600] sm:$0xff]
        %v1789 = vld [vmem:[%s3 + $0x608] sm:$0xff]
        %v1790 = vld [vmem:[%s3 + $0x610] sm:$0xff]
        %v1791 = vld [vmem:[%s3 + $0x618] sm:$0xff]
        %v1792 = vld [vmem:[%s3 + $0x620] sm:$0xff]
        %v1793 = vld [vmem:[%s3 + $0x628] sm:$0xff]
        %v1794 = vld [vmem:[%s3 + $0x630] sm:$0xff]
        %v1795 = vld [vmem:[%s3 + $0x638] sm:$0xff]
        %v1796 = vld [vmem:[%s3 + $0x640] sm:$0xff]
        %v1797 = vld [vmem:[%s3 + $0x648] sm:$0xff]
        %v1798 = vld [vmem:[%s3 + $0x650] sm:$0xff]
        %v1799 = vld [vmem:[%s3 + $0x658] sm:$0xff]
        %v1800 = vld [vmem:[%s3 + $0x660] sm:$0xff]
        %v1801 = vld [vmem:[%s3 + $0x668] sm:$0xff]
        %v1802 = vld [vmem:[%s3 + $0x670] sm:$0xff]
        %v1803 = vld [vmem:[%s3 + $0x678] sm:$0xff]
        %v1804 = vld [vmem:[%s3 + $0x680] sm:$0xff]
        %v1805 = vld [vmem:[%s3 + $0x688] sm:$0xff]
        %v1806 = vld [vmem:[%s3 + $0x690] sm:$0xff]
        %v1807 = vld [vmem:[%s3 + $0x698] sm:$0xff]
        %v1808 = vld [vmem:[%s3 + $0x6a0] sm:$0xff]
        %v1809 = vld [vmem:[%s3 + $0x6a8] sm:$0xff]
        %v1810 = vld [vmem:[%s3 + $0x6b0] sm:$0xff]
        %v1811 = vld [vmem:[%s3 + $0x6b8] sm:$0xff]
        %v1812 = vld [vmem:[%s3 + $0x6c0] sm:$0xff]
        %v1813 = vld [vmem:[%s3 + $0x6c8] sm:$0xff]
        %v1814 = vld [vmem:[%s3 + $0x6d0] sm:$0xff]
        %v1815 = vld [vmem:[%s3 + $0x6d8] sm:$0xff]
        %v1816 = vld [vmem:[%s3 + $0x6e0] sm:$0xff]
        %v1817 = vld [vmem:[%s3 + $0x6e8] sm:$0x7f]
        %v1818 = vld [vmem:[%s4] sm:$0x1]
        %v1820 = vlaneseq
        %v1821 = vshrl.u32 %v1820, 7
        %v1822 = vsub.s32 0, %v1821
        %v1823 = vrot.slane %v1818, %v1822
        %v1826 = vsel %vm739, %v1595, 0
        %vm1828 = vcmask 1046528
        %v1830 = vsel %vm1828, %v1817, 0
        %1832 = vmatprep.subr.mxu0 0.0
        %1833 = vmatpush1.msra.mxu0 %v1596
        %1834 = vmatprep.subr.mxu0 0.0
        %1835 = vmatpush1.msra.mxu0 %v1597
        %1836 = vmatprep.subr.mxu0 0.0
        %1837 = vmatpush1.msra.mxu0 %v1598
        %1838 = vmatprep.subr.mxu0 0.0
        %1839 = vmatpush1.msra.mxu0 %v1599
        %1840 = vmatprep.subr.mxu0 0.0
        %1841 = vmatpush1.msra.mxu0 %v1600
        %1842 = vmatprep.subr.mxu0 0.0
        %1843 = vmatpush1.msra.mxu0 %v1601
        %1844 = vmatprep.subr.mxu0 0.0
        %1845 = vmatpush1.msra.mxu0 %v1602
        %1846 = vmatprep.subr.mxu0 0.0
        %1847 = vmatpush1.msra.mxu0 %v1603
        %1848 = vmatprep.subr.mxu0 0.0
        %1849 = vmatpush1.msra.mxu0 %v1604
        %1850 = vmatprep.subr.mxu0 0.0
        %1851 = vmatpush1.msra.mxu0 %v1605
        %1852 = vmatprep.subr.mxu0 0.0
        %1853 = vmatpush1.msra.mxu0 %v1606
        %1854 = vmatprep.subr.mxu0 0.0
        %1855 = vmatpush1.msra.mxu0 %v1607
        %1856 = vmatprep.subr.mxu0 0.0
        %1857 = vmatpush1.msra.mxu0 %v1608
        %1858 = vmatprep.subr.mxu0 0.0
        %1859 = vmatpush1.msra.mxu0 %v1609
        %1860 = vmatprep.subr.mxu0 0.0
        %1861 = vmatpush1.msra.mxu0 %v1610
        %1862 = vmatprep.subr.mxu0 0.0
        %1863 = vmatpush1.msra.mxu0 %v1611
        %1864 = vmatprep.subr.mxu0 0.0
        %1865 = vmatpush1.msra.mxu0 %v1612
        %1866 = vmatprep.subr.mxu0 0.0
        %1867 = vmatpush1.msra.mxu0 %v1613
        %1868 = vmatprep.subr.mxu0 0.0
        %1869 = vmatpush1.msra.mxu0 %v1614
        %1870 = vmatprep.subr.mxu0 0.0
        %1871 = vmatpush1.msra.mxu0 %v1615
        %1872 = vmatprep.subr.mxu0 0.0
        %1873 = vmatpush1.msra.mxu0 %v1616
        %1874 = vmatprep.subr.mxu0 0.0
        %1875 = vmatpush1.msra.mxu0 %v1617
        %1876 = vmatprep.subr.mxu0 0.0
        %1877 = vmatpush1.msra.mxu0 %v1618
        %1878 = vmatprep.subr.mxu0 0.0
        %1879 = vmatpush1.msra.mxu0 %v1619
        %1880 = vmatprep.subr.mxu0 0.0
        %1881 = vmatpush1.msra.mxu0 %v1620
        %1882 = vmatprep.subr.mxu0 0.0
        %1883 = vmatpush1.msra.mxu0 %v1621
        %1884 = vmatprep.subr.mxu0 0.0
        %1885 = vmatpush1.msra.mxu0 %v1622
        %1886 = vmatprep.subr.mxu0 0.0
        %1887 = vmatpush1.msra.mxu0 %v1623
        %1888 = vmatprep.subr.mxu0 0.0
        %1889 = vmatpush1.msra.mxu0 %v1624
        %1890 = vmatprep.subr.mxu0 0.0
        %1891 = vmatpush1.msra.mxu0 %v1625
        %1892 = vmatprep.subr.mxu0 0.0
        %1893 = vmatpush1.msra.mxu0 %v1626
        %1894 = vmatprep.subr.mxu0 0.0
        %1895 = vmatpush1.msra.mxu0 %v1627
        %1896 = vmatprep.mubr.f32.mxu0 %v1583
        %1897 = vmatmul.mubr.f32.gmra.mrb[0].mxu0 %v1582
        %v1898 = vpop.f32.mrb[0].mxu0
        %v1899 = vadd.f32 %v1823, %v1898
        %v1900 = vpop.f32.mrb[0].mxu0
        %1901 = vdwg.mxu0
        %1902 = vmatprep.subr.mxu0 0.0
        %1903 = vmatpush1.msra.mxu0 %v1628
        %1904 = vmatprep.subr.mxu0 0.0
        %1905 = vmatpush1.msra.mxu0 %v1629
        %1906 = vmatprep.subr.mxu0 0.0
        %1907 = vmatpush1.msra.mxu0 %v1630
        %1908 = vmatprep.subr.mxu0 0.0
        %1909 = vmatpush1.msra.mxu0 %v1631
        %1910 = vmatprep.subr.mxu0 0.0
        %1911 = vmatpush1.msra.mxu0 %v1632
        %1912 = vmatprep.subr.mxu0 0.0
        %1913 = vmatpush1.msra.mxu0 %v1633
        %1914 = vmatprep.subr.mxu0 0.0
        %1915 = vmatpush1.msra.mxu0 %v1634
        %1916 = vmatprep.subr.mxu0 0.0
        %1917 = vmatpush1.msra.mxu0 %v1635
        %1918 = vmatprep.subr.mxu0 0.0
        %1919 = vmatpush1.msra.mxu0 %v1636
        %1920 = vmatprep.subr.mxu0 0.0
        %1921 = vmatpush1.msra.mxu0 %v1637
        %1922 = vmatprep.subr.mxu0 0.0
        %1923 = vmatpush1.msra.mxu0 %v1638
        %1924 = vmatprep.subr.mxu0 0.0
        %1925 = vmatpush1.msra.mxu0 %v1639
        %1926 = vmatprep.subr.mxu0 0.0
        %1927 = vmatpush1.msra.mxu0 %v1640
        %1928 = vmatprep.subr.mxu0 0.0
        %1929 = vmatpush1.msra.mxu0 %v1641
        %1930 = vmatprep.subr.mxu0 0.0
        %1931 = vmatpush1.msra.mxu0 %v1642
        %1932 = vmatprep.subr.mxu0 0.0
        %1933 = vmatpush1.msra.mxu0 %v1643
        %1934 = vmatprep.subr.mxu0 0.0
        %1935 = vmatpush1.msra.mxu0 %v1644
        %1936 = vmatprep.subr.mxu0 0.0
        %1937 = vmatpush1.msra.mxu0 %v1645
        %1938 = vmatprep.subr.mxu0 0.0
        %1939 = vmatpush1.msra.mxu0 %v1646
        %1940 = vmatprep.subr.mxu0 0.0
        %1941 = vmatpush1.msra.mxu0 %v1647
        %1942 = vmatprep.subr.mxu0 0.0
        %1943 = vmatpush1.msra.mxu0 %v1648
        %1944 = vmatprep.subr.mxu0 0.0
        %1945 = vmatpush1.msra.mxu0 %v1649
        %1946 = vmatprep.subr.mxu0 0.0
        %1947 = vmatpush1.msra.mxu0 %v1650
        %1948 = vmatprep.subr.mxu0 0.0
        %1949 = vmatpush1.msra.mxu0 %v1651
        %1950 = vmatprep.subr.mxu0 0.0
        %1951 = vmatpush1.msra.mxu0 %v1652
        %1952 = vmatprep.subr.mxu0 0.0
        %1953 = vmatpush1.msra.mxu0 %v1653
        %1954 = vmatprep.subr.mxu0 0.0
        %1955 = vmatpush1.msra.mxu0 %v1654
        %1956 = vmatprep.subr.mxu0 0.0
        %1957 = vmatpush1.msra.mxu0 %v1655
        %1958 = vmatprep.subr.mxu0 0.0
        %1959 = vmatpush1.msra.mxu0 %v1656
        %1960 = vmatprep.subr.mxu0 0.0
        %1961 = vmatpush1.msra.mxu0 %v1657
        %1962 = vmatprep.subr.mxu0 0.0
        %1963 = vmatpush1.msra.mxu0 %v1658
        %1964 = vmatprep.subr.mxu0 0.0
        %1965 = vmatpush1.msra.mxu0 %v1659
        %1966 = vmatprep.mubr.f32.mxu0 %v1585
        %1967 = vmatmul.mubr.f32.gmra.mrb[0].mxu0 %v1584
        %v1968 = vpop.f32.mrb[0].mxu0
        %v1969 = vadd.f32 %v1899, %v1968
        %v1970 = vpop.f32.mrb[0].mxu0
        %1971 = vdwg.mxu0
        %1972 = vmatprep.subr.mxu0 0.0
        %1973 = vmatpush1.msra.mxu0 %v1660
        %1974 = vmatprep.subr.mxu0 0.0
        %1975 = vmatpush1.msra.mxu0 %v1661
        %1976 = vmatprep.subr.mxu0 0.0
        %1977 = vmatpush1.msra.mxu0 %v1662
        %1978 = vmatprep.subr.mxu0 0.0
        %1979 = vmatpush1.msra.mxu0 %v1663
        %1980 = vmatprep.subr.mxu0 0.0
        %1981 = vmatpush1.msra.mxu0 %v1664
        %1982 = vmatprep.subr.mxu0 0.0
        %1983 = vmatpush1.msra.mxu0 %v1665
        %1984 = vmatprep.subr.mxu0 0.0
        %1985 = vmatpush1.msra.mxu0 %v1666
        %1986 = vmatprep.subr.mxu0 0.0
        %1987 = vmatpush1.msra.mxu0 %v1667
        %1988 = vmatprep.subr.mxu0 0.0
        %1989 = vmatpush1.msra.mxu0 %v1668
        %1990 = vmatprep.subr.mxu0 0.0
        %1991 = vmatpush1.msra.mxu0 %v1669
        %1992 = vmatprep.subr.mxu0 0.0
        %1993 = vmatpush1.msra.mxu0 %v1670
        %1994 = vmatprep.subr.mxu0 0.0
        %1995 = vmatpush1.msra.mxu0 %v1671
        %1996 = vmatprep.subr.mxu0 0.0
        %1997 = vmatpush1.msra.mxu0 %v1672
        %1998 = vmatprep.subr.mxu0 0.0
        %1999 = vmatpush1.msra.mxu0 %v1673
        %2000 = vmatprep.subr.mxu0 0.0
        %2001 = vmatpush1.msra.mxu0 %v1674
        %2002 = vmatprep.subr.mxu0 0.0
        %2003 = vmatpush1.msra.mxu0 %v1675
        %2004 = vmatprep.subr.mxu0 0.0
        %2005 = vmatpush1.msra.mxu0 %v1676
        %2006 = vmatprep.subr.mxu0 0.0
        %2007 = vmatpush1.msra.mxu0 %v1677
        %2008 = vmatprep.subr.mxu0 0.0
        %2009 = vmatpush1.msra.mxu0 %v1678
        %2010 = vmatprep.subr.mxu0 0.0
        %2011 = vmatpush1.msra.mxu0 %v1679
        %2012 = vmatprep.subr.mxu0 0.0
        %2013 = vmatpush1.msra.mxu0 %v1680
        %2014 = vmatprep.subr.mxu0 0.0
        %2015 = vmatpush1.msra.mxu0 %v1681
        %2016 = vmatprep.subr.mxu0 0.0
        %2017 = vmatpush1.msra.mxu0 %v1682
        %2018 = vmatprep.subr.mxu0 0.0
        %2019 = vmatpush1.msra.mxu0 %v1683
        %2020 = vmatprep.subr.mxu0 0.0
        %2021 = vmatpush1.msra.mxu0 %v1684
        %2022 = vmatprep.subr.mxu0 0.0
        %2023 = vmatpush1.msra.mxu0 %v1685
        %2024 = vmatprep.subr.mxu0 0.0
        %2025 = vmatpush1.msra.mxu0 %v1686
        %2026 = vmatprep.subr.mxu0 0.0
        %2027 = vmatpush1.msra.mxu0 %v1687
        %2028 = vmatprep.subr.mxu0 0.0
        %2029 = vmatpush1.msra.mxu0 %v1688
        %2030 = vmatprep.subr.mxu0 0.0
        %2031 = vmatpush1.msra.mxu0 %v1689
        %2032 = vmatprep.subr.mxu0 0.0
        %2033 = vmatpush1.msra.mxu0 %v1690
        %2034 = vmatprep.subr.mxu0 0.0
        %2035 = vmatpush1.msra.mxu0 %v1691
        %2036 = vmatprep.mubr.f32.mxu0 %v1587
        %2037 = vmatmul.mubr.f32.gmra.mrb[0].mxu0 %v1586
        %v2038 = vpop.f32.mrb[0].mxu0
        %v2039 = vadd.f32 %v1969, %v2038
        %v2040 = vpop.f32.mrb[0].mxu0
        %2041 = vdwg.mxu0
        %2042 = vmatprep.subr.mxu0 0.0
        %2043 = vmatpush1.msra.mxu0 %v1692
        %2044 = vmatprep.subr.mxu0 0.0
        %2045 = vmatpush1.msra.mxu0 %v1693
        %2046 = vmatprep.subr.mxu0 0.0
        %2047 = vmatpush1.msra.mxu0 %v1694
        %2048 = vmatprep.subr.mxu0 0.0
        %2049 = vmatpush1.msra.mxu0 %v1695
        %2050 = vmatprep.subr.mxu0 0.0
        %2051 = vmatpush1.msra.mxu0 %v1696
        %2052 = vmatprep.subr.mxu0 0.0
        %2053 = vmatpush1.msra.mxu0 %v1697
        %2054 = vmatprep.subr.mxu0 0.0
        %2055 = vmatpush1.msra.mxu0 %v1698
        %2056 = vmatprep.subr.mxu0 0.0
        %2057 = vmatpush1.msra.mxu0 %v1699
        %2058 = vmatprep.subr.mxu0 0.0
        %2059 = vmatpush1.msra.mxu0 %v1700
        %2060 = vmatprep.subr.mxu0 0.0
        %2061 = vmatpush1.msra.mxu0 %v1701
        %2062 = vmatprep.subr.mxu0 0.0
        %2063 = vmatpush1.msra.mxu0 %v1702
        %2064 = vmatprep.subr.mxu0 0.0
        %2065 = vmatpush1.msra.mxu0 %v1703
        %2066 = vmatprep.subr.mxu0 0.0
        %2067 = vmatpush1.msra.mxu0 %v1704
        %2068 = vmatprep.subr.mxu0 0.0
        %2069 = vmatpush1.msra.mxu0 %v1705
        %2070 = vmatprep.subr.mxu0 0.0
        %2071 = vmatpush1.msra.mxu0 %v1706
        %2072 = vmatprep.subr.mxu0 0.0
        %2073 = vmatpush1.msra.mxu0 %v1707
        %2074 = vmatprep.subr.mxu0 0.0
        %2075 = vmatpush1.msra.mxu0 %v1708
        %2076 = vmatprep.subr.mxu0 0.0
        %2077 = vmatpush1.msra.mxu0 %v1709
        %2078 = vmatprep.subr.mxu0 0.0
        %2079 = vmatpush1.msra.mxu0 %v1710
        %2080 = vmatprep.subr.mxu0 0.0
        %2081 = vmatpush1.msra.mxu0 %v1711
        %2082 = vmatprep.subr.mxu0 0.0
        %2083 = vmatpush1.msra.mxu0 %v1712
        %2084 = vmatprep.subr.mxu0 0.0
        %2085 = vmatpush1.msra.mxu0 %v1713
        %2086 = vmatprep.subr.mxu0 0.0
        %2087 = vmatpush1.msra.mxu0 %v1714
        %2088 = vmatprep.subr.mxu0 0.0
        %2089 = vmatpush1.msra.mxu0 %v1715
        %2090 = vmatprep.subr.mxu0 0.0
        %2091 = vmatpush1.msra.mxu0 %v1716
        %2092 = vmatprep.subr.mxu0 0.0
        %2093 = vmatpush1.msra.mxu0 %v1717
        %2094 = vmatprep.subr.mxu0 0.0
        %2095 = vmatpush1.msra.mxu0 %v1718
        %2096 = vmatprep.subr.mxu0 0.0
        %2097 = vmatpush1.msra.mxu0 %v1719
        %2098 = vmatprep.subr.mxu0 0.0
        %2099 = vmatpush1.msra.mxu0 %v1720
        %2100 = vmatprep.subr.mxu0 0.0
        %2101 = vmatpush1.msra.mxu0 %v1721
        %2102 = vmatprep.subr.mxu0 0.0
        %2103 = vmatpush1.msra.mxu0 %v1722
        %2104 = vmatprep.subr.mxu0 0.0
        %2105 = vmatpush1.msra.mxu0 %v1723
        %2106 = vmatprep.mubr.f32.mxu0 %v1589
        %2107 = vmatmul.mubr.f32.gmra.mrb[0].mxu0 %v1588
        %v2108 = vpop.f32.mrb[0].mxu0
        %v2109 = vadd.f32 %v2039, %v2108
        %v2110 = vpop.f32.mrb[0].mxu0
        %2111 = vdwg.mxu0
        %2112 = vmatprep.subr.mxu0 0.0
        %2113 = vmatpush1.msra.mxu0 %v1724
        %2114 = vmatprep.subr.mxu0 0.0
        %2115 = vmatpush1.msra.mxu0 %v1725
        %2116 = vmatprep.subr.mxu0 0.0
        %2117 = vmatpush1.msra.mxu0 %v1726
        %2118 = vmatprep.subr.mxu0 0.0
        %2119 = vmatpush1.msra.mxu0 %v1727
        %2120 = vmatprep.subr.mxu0 0.0
        %2121 = vmatpush1.msra.mxu0 %v1728
        %2122 = vmatprep.subr.mxu0 0.0
        %2123 = vmatpush1.msra.mxu0 %v1729
        %2124 = vmatprep.subr.mxu0 0.0
        %2125 = vmatpush1.msra.mxu0 %v1730
        %2126 = vmatprep.subr.mxu0 0.0
        %2127 = vmatpush1.msra.mxu0 %v1731
        %2128 = vmatprep.subr.mxu0 0.0
        %2129 = vmatpush1.msra.mxu0 %v1732
        %2130 = vmatprep.subr.mxu0 0.0
        %2131 = vmatpush1.msra.mxu0 %v1733
        %2132 = vmatprep.subr.mxu0 0.0
        %2133 = vmatpush1.msra.mxu0 %v1734
        %2134 = vmatprep.subr.mxu0 0.0
        %2135 = vmatpush1.msra.mxu0 %v1735
        %2136 = vmatprep.subr.mxu0 0.0
        %2137 = vmatpush1.msra.mxu0 %v1736
        %2138 = vmatprep.subr.mxu0 0.0
        %2139 = vmatpush1.msra.mxu0 %v1737
        %2140 = vmatprep.subr.mxu0 0.0
        %2141 = vmatpush1.msra.mxu0 %v1738
        %2142 = vmatprep.subr.mxu0 0.0
        %2143 = vmatpush1.msra.mxu0 %v1739
        %2144 = vmatprep.subr.mxu0 0.0
        %2145 = vmatpush1.msra.mxu0 %v1740
        %2146 = vmatprep.subr.mxu0 0.0
        %2147 = vmatpush1.msra.mxu0 %v1741
        %2148 = vmatprep.subr.mxu0 0.0
        %2149 = vmatpush1.msra.mxu0 %v1742
        %2150 = vmatprep.subr.mxu0 0.0
        %2151 = vmatpush1.msra.mxu0 %v1743
        %2152 = vmatprep.subr.mxu0 0.0
        %2153 = vmatpush1.msra.mxu0 %v1744
        %2154 = vmatprep.subr.mxu0 0.0
        %2155 = vmatpush1.msra.mxu0 %v1745
        %2156 = vmatprep.subr.mxu0 0.0
        %2157 = vmatpush1.msra.mxu0 %v1746
        %2158 = vmatprep.subr.mxu0 0.0
        %2159 = vmatpush1.msra.mxu0 %v1747
        %2160 = vmatprep.subr.mxu0 0.0
        %2161 = vmatpush1.msra.mxu0 %v1748
        %2162 = vmatprep.subr.mxu0 0.0
        %2163 = vmatpush1.msra.mxu0 %v1749
        %2164 = vmatprep.subr.mxu0 0.0
        %2165 = vmatpush1.msra.mxu0 %v1750
        %2166 = vmatprep.subr.mxu0 0.0
        %2167 = vmatpush1.msra.mxu0 %v1751
        %2168 = vmatprep.subr.mxu0 0.0
        %2169 = vmatpush1.msra.mxu0 %v1752
        %2170 = vmatprep.subr.mxu0 0.0
        %2171 = vmatpush1.msra.mxu0 %v1753
        %2172 = vmatprep.subr.mxu0 0.0
        %2173 = vmatpush1.msra.mxu0 %v1754
        %2174 = vmatprep.subr.mxu0 0.0
        %2175 = vmatpush1.msra.mxu0 %v1755
        %2176 = vmatprep.mubr.f32.mxu0 %v1591
        %2177 = vmatmul.mubr.f32.gmra.mrb[0].mxu0 %v1590
        %v2178 = vpop.f32.mrb[0].mxu0
        %v2179 = vadd.f32 %v2109, %v2178
        %v2180 = vpop.f32.mrb[0].mxu0
        %2181 = vdwg.mxu0
        %2182 = vmatprep.subr.mxu0 0.0
        %2183 = vmatpush1.msra.mxu0 %v1756
        %2184 = vmatprep.subr.mxu0 0.0
        %2185 = vmatpush1.msra.mxu0 %v1757
        %2186 = vmatprep.subr.mxu0 0.0
        %2187 = vmatpush1.msra.mxu0 %v1758
        %2188 = vmatprep.subr.mxu0 0.0
        %2189 = vmatpush1.msra.mxu0 %v1759
        %2190 = vmatprep.subr.mxu0 0.0
        %2191 = vmatpush1.msra.mxu0 %v1760
        %2192 = vmatprep.subr.mxu0 0.0
        %2193 = vmatpush1.msra.mxu0 %v1761
        %2194 = vmatprep.subr.mxu0 0.0
        %2195 = vmatpush1.msra.mxu0 %v1762
        %2196 = vmatprep.subr.mxu0 0.0
        %2197 = vmatpush1.msra.mxu0 %v1763
        %2198 = vmatprep.subr.mxu0 0.0
        %2199 = vmatpush1.msra.mxu0 %v1764
        %2200 = vmatprep.subr.mxu0 0.0
        %2201 = vmatpush1.msra.mxu0 %v1765
        %2202 = vmatprep.subr.mxu0 0.0
        %2203 = vmatpush1.msra.mxu0 %v1766
        %2204 = vmatprep.subr.mxu0 0.0
        %2205 = vmatpush1.msra.mxu0 %v1767
        %2206 = vmatprep.subr.mxu0 0.0
        %2207 = vmatpush1.msra.mxu0 %v1768
        %2208 = vmatprep.subr.mxu0 0.0
        %2209 = vmatpush1.msra.mxu0 %v1769
        %2210 = vmatprep.subr.mxu0 0.0
        %2211 = vmatpush1.msra.mxu0 %v1770
        %2212 = vmatprep.subr.mxu0 0.0
        %2213 = vmatpush1.msra.mxu0 %v1771
        %2214 = vmatprep.subr.mxu0 0.0
        %2215 = vmatpush1.msra.mxu0 %v1772
        %2216 = vmatprep.subr.mxu0 0.0
        %2217 = vmatpush1.msra.mxu0 %v1773
        %2218 = vmatprep.subr.mxu0 0.0
        %2219 = vmatpush1.msra.mxu0 %v1774
        %2220 = vmatprep.subr.mxu0 0.0
        %2221 = vmatpush1.msra.mxu0 %v1775
        %2222 = vmatprep.subr.mxu0 0.0
        %2223 = vmatpush1.msra.mxu0 %v1776
        %2224 = vmatprep.subr.mxu0 0.0
        %2225 = vmatpush1.msra.mxu0 %v1777
        %2226 = vmatprep.subr.mxu0 0.0
        %2227 = vmatpush1.msra.mxu0 %v1778
        %2228 = vmatprep.subr.mxu0 0.0
        %2229 = vmatpush1.msra.mxu0 %v1779
        %2230 = vmatprep.subr.mxu0 0.0
        %2231 = vmatpush1.msra.mxu0 %v1780
        %2232 = vmatprep.subr.mxu0 0.0
        %2233 = vmatpush1.msra.mxu0 %v1781
        %2234 = vmatprep.subr.mxu0 0.0
        %2235 = vmatpush1.msra.mxu0 %v1782
        %2236 = vmatprep.subr.mxu0 0.0
        %2237 = vmatpush1.msra.mxu0 %v1783
        %2238 = vmatprep.subr.mxu0 0.0
        %2239 = vmatpush1.msra.mxu0 %v1784
        %2240 = vmatprep.subr.mxu0 0.0
        %2241 = vmatpush1.msra.mxu0 %v1785
        %2242 = vmatprep.subr.mxu0 0.0
        %2243 = vmatpush1.msra.mxu0 %v1786
        %2244 = vmatprep.subr.mxu0 0.0
        %2245 = vmatpush1.msra.mxu0 %v1787
        %2246 = vmatprep.mubr.f32.mxu0 %v1593
        %2247 = vmatmul.mubr.f32.gmra.mrb[0].mxu0 %v1592
        %v2248 = vpop.f32.mrb[0].mxu0
        %v2249 = vadd.f32 %v2179, %v2248
        %v2250 = vpop.f32.mrb[0].mxu0
        %2251 = vdwg.mxu0
        %2252 = vmatprep.subr.mxu0 0.0
        %2253 = vmatpush1.msra.mxu0 %v1788
        %2254 = vmatprep.subr.mxu0 0.0
        %2255 = vmatpush1.msra.mxu0 %v1789
        %2256 = vmatprep.subr.mxu0 0.0
        %2257 = vmatpush1.msra.mxu0 %v1790
        %2258 = vmatprep.subr.mxu0 0.0
        %2259 = vmatpush1.msra.mxu0 %v1791
        %2260 = vmatprep.subr.mxu0 0.0
        %2261 = vmatpush1.msra.mxu0 %v1792
        %2262 = vmatprep.subr.mxu0 0.0
        %2263 = vmatpush1.msra.mxu0 %v1793
        %2264 = vmatprep.subr.mxu0 0.0
        %2265 = vmatpush1.msra.mxu0 %v1794
        %2266 = vmatprep.subr.mxu0 0.0
        %2267 = vmatpush1.msra.mxu0 %v1795
        %2268 = vmatprep.subr.mxu0 0.0
        %2269 = vmatpush1.msra.mxu0 %v1796
        %2270 = vmatprep.subr.mxu0 0.0
        %2271 = vmatpush1.msra.mxu0 %v1797
        %2272 = vmatprep.subr.mxu0 0.0
        %2273 = vmatpush1.msra.mxu0 %v1798
        %2274 = vmatprep.subr.mxu0 0.0
        %2275 = vmatpush1.msra.mxu0 %v1799
        %2276 = vmatprep.subr.mxu0 0.0
        %2277 = vmatpush1.msra.mxu0 %v1800
        %2278 = vmatprep.subr.mxu0 0.0
        %2279 = vmatpush1.msra.mxu0 %v1801
        %2280 = vmatprep.subr.mxu0 0.0
        %2281 = vmatpush1.msra.mxu0 %v1802
        %2282 = vmatprep.subr.mxu0 0.0
        %2283 = vmatpush1.msra.mxu0 %v1803
        %2284 = vmatprep.subr.mxu0 0.0
        %2285 = vmatpush1.msra.mxu0 %v1804
        %2286 = vmatprep.subr.mxu0 0.0
        %2287 = vmatpush1.msra.mxu0 %v1805
        %2288 = vmatprep.subr.mxu0 0.0
        %2289 = vmatpush1.msra.mxu0 %v1806
        %2290 = vmatprep.subr.mxu0 0.0
        %2291 = vmatpush1.msra.mxu0 %v1807
        %2292 = vmatprep.subr.mxu0 0.0
        %2293 = vmatpush1.msra.mxu0 %v1808
        %2294 = vmatprep.subr.mxu0 0.0
        %2295 = vmatpush1.msra.mxu0 %v1809
        %2296 = vmatprep.subr.mxu0 0.0
        %2297 = vmatpush1.msra.mxu0 %v1810
        %2298 = vmatprep.subr.mxu0 0.0
        %2299 = vmatpush1.msra.mxu0 %v1811
        %2300 = vmatprep.subr.mxu0 0.0
        %2301 = vmatpush1.msra.mxu0 %v1812
        %2302 = vmatprep.subr.mxu0 0.0
        %2303 = vmatpush1.msra.mxu0 %v1813
        %2304 = vmatprep.subr.mxu0 0.0
        %2305 = vmatpush1.msra.mxu0 %v1814
        %2306 = vmatprep.subr.mxu0 0.0
        %2307 = vmatpush1.msra.mxu0 %v1815
        %2308 = vmatprep.subr.mxu0 0.0
        %2309 = vmatpush1.msra.mxu0 %v1816
        %2310 = vmatprep.subr.mxu0 0.0
        %2311 = vmatpush1.msra.mxu0 %v1830
        %2312 = vmatprep.subr.mxu0 0.0
        %2313 = vmatpush1.msra.mxu0 0.0
        %2314 = vmatprep.subr.mxu0 0.0
        %2315 = vmatpush1.msra.mxu0 0.0
        %2316 = vmatprep.mubr.f32.mxu0 %v1826
        %2317 = vmatmul.mubr.f32.gmra.mrb[0].mxu0 %v1594
        %v2318 = vpop.f32.mrb[0].mxu0
        %v2319 = vadd.f32 %v2249, %v2318
        %v2320 = vpop.f32.mrb[0].mxu0
        %2321 = vdwg.mxu0
        %vm2322 = vcmask 261120
        %2323 = vst.msk [vmem:[%s248] sm:$0xff] %vm2322, %v2319
        %v2325 = vsel %vm2322, %v2319, 0
        %2327 = vmatprep.subr.mxu0 0.0
        %2328 = vmatpush1.xpose.msra.mxu0 %v2325
        %2329 = vmatprep.subr.mxu0 0.0
        %2330 = vmatpush1.xpose.msra.mxu0 0.0
        %2331 = vmatprep.subr.mxu0 0.0
        %2332 = vmatpush1.xpose.msra.mxu0 0.0
        %2333 = vmatprep.subr.mxu0 0.0
        %2334 = vmatpush1.xpose.msra.mxu0 0.0
        %2335 = vmatprep.subr.mxu0 0.0
        %2336 = vmatpush1.xpose.msra.mxu0 0.0
        %2337 = vmatprep.subr.mxu0 0.0
        %2338 = vmatpush1.xpose.msra.mxu0 0.0
        %2339 = vmatprep.subr.mxu0 0.0
        %2340 = vmatpush1.xpose.msra.mxu0 0.0
        %2341 = vmatprep.subr.mxu0 0.0
        %2342 = vmatpush1.xpose.msra.mxu0 0.0
        %2343 = vmatprep.subr.mxu0 0.0
        %2344 = vmatpush1.xpose.msra.mxu0 0.0
        %2345 = vmatprep.subr.mxu0 0.0
        %2346 = vmatpush1.xpose.msra.mxu0 0.0
        %2347 = vmatprep.subr.mxu0 0.0
        %2348 = vmatpush1.xpose.msra.mxu0 0.0
        %2349 = vmatprep.subr.mxu0 0.0
        %2350 = vmatpush1.xpose.msra.mxu0 0.0
        %2351 = vmatprep.subr.mxu0 0.0
        %2352 = vmatpush1.xpose.msra.mxu0 0.0
        %2353 = vmatprep.subr.mxu0 0.0
        %2354 = vmatpush1.xpose.msra.mxu0 0.0
        %2355 = vmatprep.subr.mxu0 0.0
        %2356 = vmatpush1.xpose.msra.mxu0 0.0
        %2357 = vmatprep.subr.mxu0 0.0
        %2358 = vmatpush1.xpose.msra.mxu0 0.0
        %2359 = vmatprep.subr.mxu0 0.0
        %2360 = vmatpush1.xpose.msra.mxu0 0.0
        %2361 = vmatprep.subr.mxu0 0.0
        %2362 = vmatpush1.xpose.msra.mxu0 0.0
        %2363 = vmatprep.subr.mxu0 0.0
        %2364 = vmatpush1.xpose.msra.mxu0 0.0
        %2365 = vmatprep.subr.mxu0 0.0
        %2366 = vmatpush1.xpose.msra.mxu0 0.0
        %2367 = vmatprep.subr.mxu0 0.0
        %2368 = vmatpush1.xpose.msra.mxu0 0.0
        %2369 = vmatprep.subr.mxu0 0.0
        %2370 = vmatpush1.xpose.msra.mxu0 0.0
        %2371 = vmatprep.subr.mxu0 0.0
        %2372 = vmatpush1.xpose.msra.mxu0 0.0
        %2373 = vmatprep.subr.mxu0 0.0
        %2374 = vmatpush1.xpose.msra.mxu0 0.0
        %2375 = vmatprep.subr.mxu0 0.0
        %2376 = vmatpush1.xpose.msra.mxu0 0.0
        %2377 = vmatprep.subr.mxu0 0.0
        %2378 = vmatpush1.xpose.msra.mxu0 0.0
        %2379 = vmatprep.subr.mxu0 0.0
        %2380 = vmatpush1.xpose.msra.mxu0 0.0
        %2381 = vmatprep.subr.mxu0 0.0
        %2382 = vmatpush1.xpose.msra.mxu0 0.0
        %2383 = vmatprep.subr.mxu0 0.0
        %2384 = vmatpush1.xpose.msra.mxu0 0.0
        %2385 = vmatprep.subr.mxu0 0.0
        %2386 = vmatpush1.xpose.msra.mxu0 0.0
        %2387 = vmatprep.subr.mxu0 0.0
        %2388 = vmatpush1.xpose.msra.mxu0 0.0
        %2389 = vmatprep.subr.mxu0 0.0
        %2390 = vmatpush1.xpose.msra.mxu0 0.0
        %2391 = vmatprep.mubr.f32.mxu0 0.0
        %2392 = vmatmul.mubr.f32.gmra.mrb[0].mxu0 %v2325
        %v2393 = vpop.f32.mrb[0].mxu0
        %v2394 = vadd.f32 0.0, %v2393
        %v2395 = vpop.f32.mrb[0].mxu0
        %2396 = vdwg.mxu0
        %v2397 = vmul.f32 %v2319, %v2319
        %v2398 = vsel %vm2322, %v2397, 0.0
        %2399 = vadd.xlane.f32.xlu0 %v2398
        %v2400 = vpop.xlane.xlu0 %2399
        %v2401 = vlaneseq
        %v2402 = vshrl.u32 %v2401, 7
        %v2403 = vlaneseq
        %v2404 = vand.u32 %v2403, 127
        %vm2405 = vcmp.eq.s32.totalorder %v2402, %v2404
        %v2406 = vsel %vm2405, %v2394, 0.0
        %vm2407 = vcmask 64512
        %v2408 = vsel %vm2407, %v2406, 0.0
        %v2409 = vrot.slane %v2408, 4
        %v2410 = vadd.f32 %v2408, %v2409
        %v2411 = vrot.slane %v2410, 2
        %v2412 = vadd.f32 %v2410, %v2411
        %v2413 = vrot.slane %v2412, 1
        %v2414 = vadd.f32 %v2412, %v2413
        %v2415 = vadd.f32 %v2400, %v2414
        %v2416 = vmul.f32 %v2394, 2.0
        %v2417 = vsub.f32 %v2415, %v2416
        %v2418 = vsel %vm2405, %v2417, 0.0
        %v2419 = vsel %vm2407, %v2418, 0.0
        %v2420 = vrot.slane %v2419, 4
        %v2421 = vadd.f32 %v2419, %v2420
        %v2422 = vrot.slane %v2421, 2
        %v2423 = vadd.f32 %v2421, %v2422
        %v2424 = vrot.slane %v2423, 1
        %v2425 = vadd.f32 %v2423, %v2424
        %v2426 = vsub.f32 %v2417, %v2425
        %v2427 = vmax.f32 %v2426, 0.0
        %2428 = vst.msk [vmem:[%s255] sm:$0xff] %vm2407, %v2427
        %s2429 = sand.u32 %s142, 1
        %s2430 = scalar_lea.sflag [#allocation3], %s2429
        %s2431 = sand.u32 %s142, 1
        %s2432 = smul.addr %s2431, 8
        %s2433 = scalar_lea.vmem [#allocation2], %s2432
        %s2434 = sand.u32 %s168, 1
        %s2435 = scalar_lea.sflag [#allocation5], %s2434
        %s2436 = sand.u32 %s168, 1
        %s2437 = smul.addr %s2436, 8
        %s2438 = scalar_lea.vmem [#allocation4], %s2437
        // Predicated region
        $region41: #{robust_image_classifier_forward.1} parent=39 // pred_check
          %p2439 = pneg %p152
        $region42: #{robust_image_classifier_forward.1} parent=39 // pred_check_branch
          %2441 = sbr.rel (%p2439) target = $region44
        $region43: #{robust_image_classifier_forward.1} parent=39 // pred_region
          %s2443 = ssub.s32 128, 128
          %2444 = vsyncadd %s2430, %s2443
          %s2445 = smul.addr %s24, 128
          %s2446 = scalar_lea.hbm %s5, %s2445
          %s2448 = sshll.u32 %s2433, 4
          %s2449 = int_to_ptr.vmem [resolvable:$true] %s2448
          %2451 = dma.vmem_to_hbm [thread:$0]  %s2449, 128, %s2446, %s2430
        $region44: #{robust_image_classifier_forward.1} parent=39 // pred_fallthru
          _
        // Predicated region
        $region45: #{robust_image_classifier_forward.1} parent=39 // pred_check
          %p2452 = pneg %p178
        $region46: #{robust_image_classifier_forward.1} parent=39 // pred_check_branch
          %2454 = sbr.rel (%p2452) target = $region48
        $region47: #{robust_image_classifier_forward.1} parent=39 // pred_region
          %s2456 = ssub.s32 128, 128
          %2457 = vsyncadd %s2435, %s2456
          %s2458 = smul.addr %s24, 128
          %s2459 = scalar_lea.hbm %s6, %s2458
          %s2461 = sshll.u32 %s2438, 4
          %s2462 = int_to_ptr.vmem [resolvable:$true] %s2461
          %2464 = dma.vmem_to_hbm [thread:$0]  %s2462, 128, %s2459, %s2435
        $region48: #{robust_image_classifier_forward.1} parent=39 // pred_fallthru
          _
      $region40: #{robust_image_classifier_forward.1} parent=5 // pred_fallthru
        _
      %p2465 = scmp.le.s32.totalorder 2, %s19
      // Predicated region
      $region49: #{robust_image_classifier_forward.1} parent=5 // pred_check
        %p2466 = pneg %p2465
      $region50: #{robust_image_classifier_forward.1} parent=5 // pred_check_branch
        %2468 = sbr.rel (%p2466) target = $region52
      $region51: #{robust_image_classifier_forward.1} parent=5 // pred_region
        %s2469 = ssub.s32 %s19, 2
        // Predicated region
        $region53: #{robust_image_classifier_forward.1} parent=51 // pred_check
          %p2470 = pneg %p158
        $region54: #{robust_image_classifier_forward.1} parent=51 // pred_check_branch
          %2472 = sbr.rel (%p2470) target = $region56
        $region55: #{robust_image_classifier_forward.1} parent=51 // pred_region
          %s2473 = sand.u32 %s143, 1
          %s2474 = scalar_lea.sflag [#allocation3], %s2473
          %s2475 = sand.u32 %s143, 1
          %s2476 = smul.addr %s2475, 8
          %s2477 = scalar_lea.vmem [#allocation2], %s2476
          %2478 = dma.done %s2474, 128
        $region56: #{robust_image_classifier_forward.1} parent=51 // pred_fallthru
          _
        // Predicated region
        $region57: #{robust_image_classifier_forward.1} parent=51 // pred_check
          %p2479 = pneg %p184
        $region58: #{robust_image_classifier_forward.1} parent=51 // pred_check_branch
          %2481 = sbr.rel (%p2479) target = $region60
        $region59: #{robust_image_classifier_forward.1} parent=51 // pred_region
          %s2482 = sand.u32 %s169, 1
          %s2483 = scalar_lea.sflag [#allocation5], %s2482
          %s2484 = sand.u32 %s169, 1
          %s2485 = smul.addr %s2484, 8
          %s2486 = scalar_lea.vmem [#allocation4], %s2485
          %2487 = dma.done %s2483, 128
        $region60: #{robust_image_classifier_forward.1} parent=51 // pred_fallthru
          _
      $region52: #{robust_image_classifier_forward.1} parent=5 // pred_fallthru
        _
    $region6: #{robust_image_classifier_forward.1} parent=1 // loop_footer
      %s23 = sadd.s32 1, %s19
    $region7: #{robust_image_classifier_forward.1} parent=1 // loop_footer_branch
      %18 = sbr.rel target = $region3
    $region8: #{robust_image_classifier_forward.1} parent=1 // loop_exit
      _
    %2488 = vsyncpa [#allocation3], 1
    %s2489 = scalar_lea.sflag [#allocation3], 1
    %2490 = vsyncpa %s2489, 1
    %2491 = vsyncpa [#allocation5], 1
    %s2492 = scalar_lea.sflag [#allocation5], 1
    %2493 = vsyncpa %s2492, 1

</llo_original>
